<compile_context>
chip_gen: v7x
topology: tpu7x:2x2x1
jax: 0.10.0
libtpu: 0.0.40
codegen_flags: <defaults>
</compile_context>

<pallas_src>
import functools

import jax
import jax.numpy as jnp
from jax.experimental import pallas as pl
from jax.experimental.pallas import tpu as pltpu


_VMEM_LIMIT_BYTES = 48 * 1024 * 1024   # below v7x's 64 MiB physical VMEM
_TILE_BUDGET_BYTES = 2 * 1024 * 1024   # ~2 MiB f32 working set per (C, tL) tile


def _choose_tile_l(L, C, budget_bytes=_TILE_BUDGET_BYTES):
    """Largest multiple-of-128 divisor of L whose (C, tL) f32 tile fits the budget.

    Returns L itself (single tile / fused path) when the whole image fits the budget
    or when L is not a multiple of 128 (BlockSpec lane-dim constraint).
    """
    if C * L * 4 <= budget_bytes or L % 128 != 0:
        # TODO(synk): images with L % 128 != 0 and a very large C*L fall back to a
        # full-L tile; a masked-tail tiling would bound VMEM for that corner case too.
        return L
    nl = L // 128
    for m in range(nl, 0, -1):
        if nl % m == 0 and C * (m * 128) * 4 <= budget_bytes:
            return m * 128
    return 128


# ---------------------------------------------------------------------------
# Kernels
# ---------------------------------------------------------------------------

def _gn_fused_kernel(x_ref, gamma_ref, beta_ref, o_ref, *, eps, inv_n):
    """Single-pass GroupNorm for one batch element. Blocks: x/o (1,G,Cg,L)."""
    x = x_ref[...].astype(jnp.float32)                                  # (1, G, Cg, L)
    s = jnp.sum(jnp.sum(x, axis=3, keepdims=True), axis=2, keepdims=True)      # (1,G,1,1)
    q = jnp.sum(jnp.sum(x * x, axis=3, keepdims=True), axis=2, keepdims=True)  # (1,G,1,1)
    mean = s * inv_n
    var = jnp.maximum(q * inv_n - mean * mean, 0.0)
    rstd = jax.lax.rsqrt(var + eps)
    g = gamma_ref[...].astype(jnp.float32)[None]                        # (1, G, Cg, 1)
    b = beta_ref[...].astype(jnp.float32)[None]
    scale = rstd * g                                                    # (1, G, Cg, 1)
    shift = b - mean * scale
    o_ref[...] = (x * scale + shift).astype(o_ref.dtype)


def _gn_stats_kernel(x_ref, mean_ref, rstd_ref, *, eps, inv_n):
    """Pass 1: accumulate per-group sum / sum-of-squares over L tiles (f32)."""
    l = pl.program_id(1)

    @pl.when(l == 0)
    def _init():
        mean_ref[...] = jnp.zeros_like(mean_ref)   # running sum
        rstd_ref[...] = jnp.zeros_like(rstd_ref)   # running sum of squares

    x = x_ref[...].astype(jnp.float32)                                  # (1, G, Cg, tL)
    ps = jnp.sum(jnp.sum(x, axis=3, keepdims=True), axis=2, keepdims=True)
    pq = jnp.sum(jnp.sum(x * x, axis=3, keepdims=True), axis=2, keepdims=True)
    mean_ref[...] += ps
    rstd_ref[...] += pq

    @pl.when(l == pl.num_programs(1) - 1)
    def _finalize():
        mean = mean_ref[...] * inv_n
        var = jnp.maximum(rstd_ref[...] * inv_n - mean * mean, 0.0)
        mean_ref[...] = mean
        rstd_ref[...] = jax.lax.rsqrt(var + eps)


def _gn_apply_kernel(x_ref, mean_ref, rstd_ref, gamma_ref, beta_ref, o_ref):
    """Pass 2: normalize one (1, G, Cg, tL) tile with precomputed group stats."""
    x = x_ref[...].astype(jnp.float32)                                  # (1, G, Cg, tL)
    g = gamma_ref[...].astype(jnp.float32)[None]                        # (1, G, Cg, 1)
    b = beta_ref[...].astype(jnp.float32)[None]
    scale = rstd_ref[...] * g                                           # (1, G, Cg, 1)
    shift = b - mean_ref[...] * scale
    o_ref[...] = (x * scale + shift).astype(o_ref.dtype)


# ---------------------------------------------------------------------------
# Wrappers
# ---------------------------------------------------------------------------

def group_norm(x, gamma, beta, *, num_groups=32, eps=1e-6, tile_l=None):
    """GroupNorm over an NCHW tensor, matching torch.nn.GroupNorm(affine=True)."""
    B, C, H, W = x.shape
    if C % num_groups != 0:
        raise ValueError(f"channels {C} must be divisible by num_groups {num_groups}")
    G = num_groups
    Cg = C // G
    L = H * W

    # Free, contiguous reshapes: group the channel axis and flatten space onto lanes.
    xg = x.reshape(B, G, Cg, L)
    gamma_g = gamma.reshape(G, Cg, 1)
    beta_g = beta.reshape(G, Cg, 1)

    tL = tile_l if tile_l is not None else _choose_tile_l(L, C)
    if L % tL != 0 or (tL != L and tL % 128 != 0):
        raise ValueError(f"tile_l={tL} must divide L={L} and be a multiple of 128")
    n_l = L // tL
    inv_n = 1.0 / float(Cg * L)

    if n_l == 1:
        # Whole per-batch image fits the VMEM budget: fused single pass, one HBM
        # read + one HBM write.
        y = pl.pallas_call(
            functools.partial(_gn_fused_kernel, eps=eps, inv_n=inv_n),
            out_shape=jax.ShapeDtypeStruct((B, G, Cg, L), x.dtype),
            grid_spec=pltpu.PrefetchScalarGridSpec(
                num_scalar_prefetch=0,
                grid=(B,),
                in_specs=[
                    pl.BlockSpec((1, G, Cg, L), lambda b: (b, 0, 0, 0)),
                    pl.BlockSpec((G, Cg, 1), lambda b: (0, 0, 0)),
                    pl.BlockSpec((G, Cg, 1), lambda b: (0, 0, 0)),
                ],
                out_specs=pl.BlockSpec((1, G, Cg, L), lambda b: (b, 0, 0, 0)),
            ),
            compiler_params=pltpu.CompilerParams(
                dimension_semantics=("parallel",),
                vmem_limit_bytes=_VMEM_LIMIT_BYTES,
            ),
        )(xg, gamma_g, beta_g)
    else:
        # Two-pass tiled scheme: bounded VMEM regardless of image size.
        # Pass 1: per-(batch, group) mean / rstd, accumulated in f32 across L tiles.
        mean, rstd = pl.pallas_call(
            functools.partial(_gn_stats_kernel, eps=eps, inv_n=inv_n),
            out_shape=(
                jax.ShapeDtypeStruct((B, G, 1, 1), jnp.float32),
                jax.ShapeDtypeStruct((B, G, 1, 1), jnp.float32),
            ),
            grid_spec=pltpu.PrefetchScalarGridSpec(
                num_scalar_prefetch=0,
                grid=(B, n_l),
                in_specs=[pl.BlockSpec((1, G, Cg, tL), lambda b, l: (b, 0, 0, l))],
                out_specs=(
                    pl.BlockSpec((1, G, 1, 1), lambda b, l: (b, 0, 0, 0)),
                    pl.BlockSpec((1, G, 1, 1), lambda b, l: (b, 0, 0, 0)),
                ),
            ),
            compiler_params=pltpu.CompilerParams(
                dimension_semantics=("parallel", "arbitrary"),
                vmem_limit_bytes=_VMEM_LIMIT_BYTES,
            ),
        )(xg)

        # Pass 2: normalize, both grid axes independent -> "parallel" (megacore-friendly),
        # lane-dense (tL multiple of 128) output stores.
        y = pl.pallas_call(
            _gn_apply_kernel,
            out_shape=jax.ShapeDtypeStruct((B, G, Cg, L), x.dtype),
            grid_spec=pltpu.PrefetchScalarGridSpec(
                num_scalar_prefetch=0,
                grid=(B, n_l),
                in_specs=[
                    pl.BlockSpec((1, G, Cg, tL), lambda b, l: (b, 0, 0, l)),
                    pl.BlockSpec((1, G, 1, 1), lambda b, l: (b, 0, 0, 0)),
                    pl.BlockSpec((1, G, 1, 1), lambda b, l: (b, 0, 0, 0)),
                    pl.BlockSpec((G, Cg, 1), lambda b, l: (0, 0, 0)),
                    pl.BlockSpec((G, Cg, 1), lambda b, l: (0, 0, 0)),
                ],
                out_specs=pl.BlockSpec((1, G, Cg, tL), lambda b, l: (b, 0, 0, l)),
            ),
            compiler_params=pltpu.CompilerParams(
                dimension_semantics=("parallel", "parallel"),
                vmem_limit_bytes=_VMEM_LIMIT_BYTES,
            ),
        )(xg, mean, rstd, gamma_g, beta_g)

    return y.reshape(B, C, H, W)


def norm_layer_forward(x, gamma=None, beta=None, *, norm_type="gn"):
    """Pallas equivalent of NormLayer.forward for an NCHW input."""
    norm_type = norm_type.lower()
    B, C, H, W = x.shape
    if norm_type == "gn":
        # nn.GroupNorm(num_groups=32, num_channels=C, eps=1e-6, affine=True)
        return group_norm(x, gamma, beta, num_groups=32, eps=1e-6)
    if norm_type == "in":
        # nn.InstanceNorm2d(C, affine=False): per-channel stats, identity affine.
        ones = jnp.ones((C,), jnp.float32)
        zeros = jnp.zeros((C,), jnp.float32)
        return group_norm(x, ones, zeros, num_groups=C, eps=1e-5)
    if norm_type == "none":
        return x * 1.0
    # TODO(synk): 'bn' needs BatchNorm running-stats state and train/eval mode; 'wn'
    # wraps a *module* with weight_norm, not a tensor op -- neither maps to a
    # stateless Pallas forward kernel.
    raise NotImplementedError(f"norm_type '{norm_type}' not supported in Pallas port")


def group_norm_ref(x, gamma, beta, *, num_groups=32, eps=1e-6):
    """Pure-JAX reference matching torch.nn.GroupNorm exactly."""
    B, C, H, W = x.shape
    xg = x.reshape(B, num_groups, -1).astype(jnp.float32)
    mean = xg.mean(axis=-1, keepdims=True)
    var = xg.var(axis=-1, keepdims=True)
    y = (xg - mean) * jax.lax.rsqrt(var + eps)
    y = y.reshape(B, C, H, W)
    y = y * gamma[None, :, None, None] + beta[None, :, None, None]
    return y.astype(x.dtype)


if __name__ == "__main__":
    # Small shapes consistent with the module: GroupNorm(32 groups) needs C % 32 == 0.
    B, C, H, W = 2, 64, 16, 16

    key = jax.random.PRNGKey(0)
    k1, k2, k3 = jax.random.split(key, 3)
    x = jax.random.normal(k1, (B, C, H, W), dtype=jnp.float32)
    gamma = 1.0 + 0.5 * jax.random.normal(k2, (C,), dtype=jnp.float32)
    beta = 0.1 * jax.random.normal(k3, (C,), dtype=jnp.float32)

    ref = group_norm_ref(x, gamma, beta, num_groups=32, eps=1e-6)

    # Default 'gn' path (small image -> fused single-pass kernel).
    out = norm_layer_forward(x, gamma, beta, norm_type="gn")
    out = jax.block_until_ready(out)
    assert out.shape == (B, C, H, W), out.shape
    assert out.dtype == x.dtype
    assert jnp.allclose(out, ref, rtol=1e-4, atol=1e-4), "fused GN mismatch vs reference"

    # Force the tiled two-pass path (tile_l=128 over L=256) to exercise it as well.
    out_tiled = group_norm(x, gamma, beta, num_groups=32, eps=1e-6, tile_l=128)
    out_tiled = jax.block_until_ready(out_tiled)
    assert jnp.allclose(out_tiled, ref, rtol=1e-4, atol=1e-4), "tiled GN mismatch vs reference"

    print("KERNEL_OK")
</pallas_src>

<mosaic_0001>
module attributes {stable_mosaic.version = 11 : i64} {
  func.func @_gn_fused_kernel(%arg0: i32, %arg1: memref<1x32x2x256xf32, #tpu.memory_space<vmem>>, %arg2: memref<32x2x1xf32, #tpu.memory_space<vmem>>, %arg3: memref<32x2x1xf32, #tpu.memory_space<vmem>>, %arg4: memref<1x32x2x256xf32, #tpu.memory_space<vmem>>) attributes {dimension_semantics = [#tpu.dimension_semantics<parallel>], iteration_bounds = array<i64: 2>, scalar_prefetch = 0 : i64, scratch_operands = 0 : i64, tpu.core_type = #tpu.core_type<tc>, window_params = [{transform_indices = @transform_0, window_bounds = array<i64: 1, 32, 2, 256>}, {pipeline_mode = #tpu.pipeline_mode<synchronous>, transform_indices = @transform_1, window_bounds = array<i64: 32, 2, 1>}, {pipeline_mode = #tpu.pipeline_mode<synchronous>, transform_indices = @transform_2, window_bounds = array<i64: 32, 2, 1>}, {transform_indices = @transform_3, window_bounds = array<i64: 1, 32, 2, 256>}]} {
    %c0 = arith.constant 0 : index
    %c0_0 = arith.constant 0 : index
    %c0_1 = arith.constant 0 : index
    %c0_2 = arith.constant 0 : index
    %0 = vector.load %arg1[%c0, %c0_0, %c0_1, %c0_2] : memref<1x32x2x256xf32, #tpu.memory_space<vmem>>, vector<1x32x2x256xf32>
    %cst = arith.constant dense<0.000000e+00> : vector<1x32x2xf32>
    %1 = vector.multi_reduction <add>, %0, %cst [3] : vector<1x32x2x256xf32> to vector<1x32x2xf32>
    %2 = vector.shape_cast %1 : vector<1x32x2xf32> to vector<1x32x2x1xf32>
    %cst_3 = arith.constant dense<0.000000e+00> : vector<1x32x1xf32>
    %3 = vector.multi_reduction <add>, %2, %cst_3 [2] : vector<1x32x2x1xf32> to vector<1x32x1xf32>
    %4 = vector.shape_cast %3 : vector<1x32x1xf32> to vector<1x32x1x1xf32>
    %5 = arith.mulf %0, %0 : vector<1x32x2x256xf32>
    %cst_4 = arith.constant dense<0.000000e+00> : vector<1x32x2xf32>
    %6 = vector.multi_reduction <add>, %5, %cst_4 [3] : vector<1x32x2x256xf32> to vector<1x32x2xf32>
    %7 = vector.shape_cast %6 : vector<1x32x2xf32> to vector<1x32x2x1xf32>
    %cst_5 = arith.constant dense<0.000000e+00> : vector<1x32x1xf32>
    %8 = vector.multi_reduction <add>, %7, %cst_5 [2] : vector<1x32x2x1xf32> to vector<1x32x1xf32>
    %9 = vector.shape_cast %8 : vector<1x32x1xf32> to vector<1x32x1x1xf32>
    %cst_6 = arith.constant 0.001953125 : f32
    %10 = vector.broadcast %cst_6 : f32 to vector<1x32x1x1xf32>
    %11 = arith.mulf %4, %10 : vector<1x32x1x1xf32>
    %cst_7 = arith.constant 0.001953125 : f32
    %12 = vector.broadcast %cst_7 : f32 to vector<1x32x1x1xf32>
    %13 = arith.mulf %9, %12 : vector<1x32x1x1xf32>
    %14 = arith.mulf %11, %11 : vector<1x32x1x1xf32>
    %15 = arith.subf %13, %14 : vector<1x32x1x1xf32>
    %cst_8 = arith.constant 0.000000e+00 : f32
    %16 = vector.broadcast %cst_8 : f32 to vector<1x32x1x1xf32>
    %17 = arith.maximumf %15, %16 : vector<1x32x1x1xf32>
    %cst_9 = arith.constant 9.99999997E-7 : f32
    %18 = vector.broadcast %cst_9 : f32 to vector<1x32x1x1xf32>
    %19 = arith.addf %17, %18 : vector<1x32x1x1xf32>
    %20 = math.rsqrt %19 : vector<1x32x1x1xf32>
    %c0_10 = arith.constant 0 : index
    %c0_11 = arith.constant 0 : index
    %c0_12 = arith.constant 0 : index
    %21 = vector.load %arg2[%c0_10, %c0_11, %c0_12] : memref<32x2x1xf32, #tpu.memory_space<vmem>>, vector<32x2x1xf32>
    %22 = vector.shape_cast %21 : vector<32x2x1xf32> to vector<1x32x2x1xf32>
    %c0_13 = arith.constant 0 : index
    %c0_14 = arith.constant 0 : index
    %c0_15 = arith.constant 0 : index
    %23 = vector.load %arg3[%c0_13, %c0_14, %c0_15] : memref<32x2x1xf32, #tpu.memory_space<vmem>>, vector<32x2x1xf32>
    %24 = vector.shape_cast %23 : vector<32x2x1xf32> to vector<1x32x2x1xf32>
    %25 = vector.broadcast %20 : vector<1x32x1x1xf32> to vector<1x32x2x1xf32>
    %26 = arith.mulf %25, %22 : vector<1x32x2x1xf32>
    %27 = vector.broadcast %11 : vector<1x32x1x1xf32> to vector<1x32x2x1xf32>
    %28 = arith.mulf %27, %26 : vector<1x32x2x1xf32>
    %29 = arith.subf %24, %28 : vector<1x32x2x1xf32>
    %30 = vector.broadcast %26 : vector<1x32x2x1xf32> to vector<1x32x2x256xf32>
    %31 = arith.mulf %0, %30 : vector<1x32x2x256xf32>
    %32 = vector.broadcast %29 : vector<1x32x2x1xf32> to vector<1x32x2x256xf32>
    %33 = arith.addf %31, %32 : vector<1x32x2x256xf32>
    %c0_16 = arith.constant 0 : index
    %c0_17 = arith.constant 0 : index
    %c0_18 = arith.constant 0 : index
    %c0_19 = arith.constant 0 : index
    %34 = vector.load %arg4[%c0_16, %c0_17, %c0_18, %c0_19] : memref<1x32x2x256xf32, #tpu.memory_space<vmem>>, vector<1x32x2x256xf32>
    tpu.vector_store %arg4[%c0_16, %c0_17, %c0_18, %c0_19], %33 {strides = array<i32>} : memref<1x32x2x256xf32, #tpu.memory_space<vmem>>, vector<1x32x2x256xf32>,
    return
  }
  func.func @transform_0(%arg0: i32) -> (i32, i32, i32, i32) {
    %c0_i32 = arith.constant 0 : i32
    %c0_i32_0 = arith.constant 0 : i32
    %c0_i32_1 = arith.constant 0 : i32
    %c0_i32_2 = arith.constant 0 : i32
    return %arg0, %c0_i32, %c0_i32_0, %c0_i32_1 : i32, i32, i32, i32
  }
  func.func @transform_1(%arg0: i32) -> (i32, i32, i32) {
    %c0_i32 = arith.constant 0 : i32
    %c0_i32_0 = arith.constant 0 : i32
    %c0_i32_1 = arith.constant 0 : i32
    %c0_i32_2 = arith.constant 0 : i32
    return %c0_i32, %c0_i32_0, %c0_i32_1 : i32, i32, i32
  }
  func.func @transform_2(%arg0: i32) -> (i32, i32, i32) {
    %c0_i32 = arith.constant 0 : i32
    %c0_i32_0 = arith.constant 0 : i32
    %c0_i32_1 = arith.constant 0 : i32
    %c0_i32_2 = arith.constant 0 : i32
    return %c0_i32, %c0_i32_0, %c0_i32_1 : i32, i32, i32
  }
  func.func @transform_3(%arg0: i32) -> (i32, i32, i32, i32) {
    %c0_i32 = arith.constant 0 : i32
    %c0_i32_0 = arith.constant 0 : i32
    %c0_i32_1 = arith.constant 0 : i32
    %c0_i32_2 = arith.constant 0 : i32
    return %arg0, %c0_i32, %c0_i32_0, %c0_i32_1 : i32, i32, i32, i32
  }
}

</mosaic_0001>

<llo_original>
// kernel: tpu_custom_call.1
$region0: #{tpu_custom_call.1}
  #allocation0 [shape = 'u32[]', space=smem, size = 0x4, offset = 0x4, fixed_abs, tag = 'smem constant byte address 0x4 - core index']
  #allocation1 [shape = 'u32[144,128]{1,0:T(1,128)}', space=vmem, size = 0x12000, scoped, tag = 'internal scratch']
  %s0 = inlined_call_operand.hbm [shape: f32[2,32,2,256], index: 0, kind: input, shape index: {}]
  %s1 = inlined_call_operand.vmem [shape: f32[32,2,1], index: 1, kind: input, shape index: {}]
  %s2 = inlined_call_operand.vmem [shape: f32[32,2,1], index: 2, kind: input, shape index: {}]
  %s3 = inlined_call_operand.hbm [shape: f32[2,32,2,256], index: 3, kind: output, shape index: {}]
  %s4 = sld [smem:[#allocation0]]
  $region49: #{tpu_custom_call.1} parent=0
    _
  %s6 = ssub.s32 1, %s4
  %s7 = scalar_select 0, %s6, %s4
  $region1: #{tpu_custom_call.1} parent=0
    #allocation2 [shape = 'u8[131072]{0}', space=vmem, size = 0x20000, scoped, tag = 'input window, operand 0']
    #allocation3 [shape = 's32[2]{0}', space=sflag, size = 0x8, scoped, tag = 'scoped memory for tpu_custom_call.1']
    #allocation4 [shape = 's32[2]{0}', space=sflag, size = 0x8, scoped, tag = 'scoped memory for tpu_custom_call.1']
    #allocation5 [shape = 'u8[131072]{0}', space=vmem, size = 0x20000, scoped, tag = 'output window, operand 0']
    %8 = vsyncpa [#allocation3], 0
    %s9 = scalar_lea.sflag [#allocation3], 1
    %10 = vsyncpa %s9, 0
    %11 = vsyncpa [#allocation4], 0
    %s12 = scalar_lea.sflag [#allocation4], 1
    %13 = vsyncpa %s12, 0
    loop: start=0, step=1, limit=4
    $region2: #{tpu_custom_call.1} parent=1 // loop_pre_header
      _
    $region3: #{tpu_custom_call.1} parent=1 // loop_header
      %s15 = sphi 0, %s19
      %p16 = scmp.ge.s32.totalorder %s15, 4
      %s25 = sphi 0, %s27
      %s28 = sphi 0, %s25
      %s29 = sphi 0, %s28
      %s45 = sphi 0, %s29
      %s49 = sphi 0, %s49
      %s51 = sphi 0, %s49
      %s52 = sphi 0, %s51
      %s66 = sphi 0, %s52
      %s70 = sphi 0, %s70
      %s72 = sphi 0, %s70
      %s73 = sphi 0, %s72
      %s87 = sphi 0, %s73
      %s93 = sphi 0, %s95
      %s96 = sphi 0, %s93
      %s97 = sphi 0, %s96
      %s113 = sphi 0, %s97
    $region4: #{tpu_custom_call.1} parent=1 // loop_header_branch
      %18 = sbr.rel (%p16) target = $region8
    $region5: #{tpu_custom_call.1} parent=1 // loop_body
      %s20 = ssub.s32 %s15, 1
      %s21 = ssub.s32 %s15, 2
      %s22 = sadd.s32 %s15, 1
      %s23 = ssub.s32 %s15, %s22
      %p24 = scmp.eq.s32.totalorder %s23, 0
      %s26 = sadd.s32 %s25, 1
      %s27 = scalar_select %p24, %s25, %s26
      %p30 = pneg %p24
      %p31 = scmp.eq.s32.totalorder %s15, 1
      %p32 = por %p30, %p31
      %p33 = scmp.ne.s32.totalorder %s25, %s28
      %p34 = scmp.eq.s32.totalorder %s15, 0
      %p35 = por %p33, %p34
      %p36 = scmp.ne.s32.totalorder %s25, %s28
      %p37 = scmp.eq.s32.totalorder %s20, 1
      %p38 = por %p36, %p37
      %p39 = scmp.ne.s32.totalorder %s28, %s29
      %p40 = scmp.eq.s32.totalorder %s20, 0
      %p41 = por %p39, %p40
      %p42 = scmp.ne.s32.totalorder %s28, %s29
      %p43 = scmp.eq.s32.totalorder %s21, 1
      %p44 = por %p42, %p43
      %p46 = scmp.ne.s32.totalorder %s29, %s45
      %p47 = scmp.eq.s32.totalorder %s21, 0
      %p48 = por %p46, %p47
      %s50 = sadd.s32 %s49, 1
      %p53 = scmp.eq.s32.totalorder %s15, 1
      %p54 = scmp.ne.s32.totalorder %s49, %s51
      %p55 = scmp.eq.s32.totalorder %s15, 0
      %p56 = por %p54, %p55
      %p57 = scmp.ne.s32.totalorder %s49, %s51
      %p58 = scmp.eq.s32.totalorder %s20, 1
      %p59 = por %p57, %p58
      %p60 = scmp.ne.s32.totalorder %s51, %s52
      %p61 = scmp.eq.s32.totalorder %s20, 0
      %p62 = por %p60, %p61
      %p63 = scmp.ne.s32.totalorder %s51, %s52
      %p64 = scmp.eq.s32.totalorder %s21, 1
      %p65 = por %p63, %p64
      %p67 = scmp.ne.s32.totalorder %s52, %s66
      %p68 = scmp.eq.s32.totalorder %s21, 0
      %p69 = por %p67, %p68
      %s71 = sadd.s32 %s70, 1
      %p74 = scmp.eq.s32.totalorder %s15, 1
      %p75 = scmp.ne.s32.totalorder %s70, %s72
      %p76 = scmp.eq.s32.totalorder %s15, 0
      %p77 = por %p75, %p76
      %p78 = scmp.ne.s32.totalorder %s70, %s72
      %p79 = scmp.eq.s32.totalorder %s20, 1
      %p80 = por %p78, %p79
      %p81 = scmp.ne.s32.totalorder %s72, %s73
      %p82 = scmp.eq.s32.totalorder %s20, 0
      %p83 = por %p81, %p82
      %p84 = scmp.ne.s32.totalorder %s72, %s73
      %p85 = scmp.eq.s32.totalorder %s21, 1
      %p86 = por %p84, %p85
      %p88 = scmp.ne.s32.totalorder %s73, %s87
      %p89 = scmp.eq.s32.totalorder %s21, 0
      %p90 = por %p88, %p89
      %s91 = ssub.s32 %s15, %s22
      %p92 = scmp.eq.s32.totalorder %s91, 0
      %s94 = sadd.s32 %s93, 1
      %s95 = scalar_select %p92, %s93, %s94
      %p98 = pneg %p92
      %p99 = scmp.eq.s32.totalorder %s15, 1
      %p100 = por %p98, %p99
      %p101 = scmp.ne.s32.totalorder %s93, %s96
      %p102 = scmp.eq.s32.totalorder %s15, 0
      %p103 = por %p101, %p102
      %p104 = scmp.ne.s32.totalorder %s93, %s96
      %p105 = scmp.eq.s32.totalorder %s20, 1
      %p106 = por %p104, %p105
      %p107 = scmp.ne.s32.totalorder %s96, %s97
      %p108 = scmp.eq.s32.totalorder %s20, 0
      %p109 = por %p107, %p108
      %p110 = scmp.ne.s32.totalorder %s96, %s97
      %p111 = scmp.eq.s32.totalorder %s21, 1
      %p112 = por %p110, %p111
      %p114 = scmp.ne.s32.totalorder %s97, %s113
      %p115 = scmp.eq.s32.totalorder %s21, 0
      %p116 = por %p114, %p115
      %p117 = scmp.le.s32.totalorder 1, %s15
      %p118 = scmp.lt.s32.totalorder %s15, 3
      %p119 = pnand %p117, %p118
      %p120 = pneg %p119
      // Predicated region
      $region9: #{tpu_custom_call.1} parent=5 // pred_check
        _
      $region10: #{tpu_custom_call.1} parent=5 // pred_check_branch
        %122 = sbr.rel (%p119) target = $region12
      $region11: #{tpu_custom_call.1} parent=5 // pred_region
        %s123 = ssub.s32 %s15, 1
        // Predicated region
        $region13: #{tpu_custom_call.1} parent=11 // pred_check
          %p124 = pneg %p62
        $region14: #{tpu_custom_call.1} parent=11 // pred_check_branch
          %126 = sbr.rel (%p124) target = $region16
        $region15: #{tpu_custom_call.1} parent=11 // pred_region
          _
        $region16: #{tpu_custom_call.1} parent=11 // pred_fallthru
          _
        // Predicated region
        $region17: #{tpu_custom_call.1} parent=11 // pred_check
          %p127 = pneg %p83
        $region18: #{tpu_custom_call.1} parent=11 // pred_check_branch
          %129 = sbr.rel (%p127) target = $region20
        $region19: #{tpu_custom_call.1} parent=11 // pred_region
          _
        $region20: #{tpu_custom_call.1} parent=11 // pred_fallthru
          _
      $region12: #{tpu_custom_call.1} parent=5 // pred_fallthru
        _
      %p130 = scmp.lt.s32.totalorder %s15, 2
      // Predicated region
      $region21: #{tpu_custom_call.1} parent=5 // pred_check
        %p131 = pneg %p130
      $region22: #{tpu_custom_call.1} parent=5 // pred_check_branch
        %133 = sbr.rel (%p131) target = $region24
      $region23: #{tpu_custom_call.1} parent=5 // pred_region
        // Predicated region
        $region25: #{tpu_custom_call.1} parent=23 // pred_check
          %p134 = pneg %p35
        $region26: #{tpu_custom_call.1} parent=23 // pred_check_branch
          %136 = sbr.rel (%p134) target = $region28
        $region27: #{tpu_custom_call.1} parent=23 // pred_region
          %s137 = sand.u32 %s25, 1
          %s138 = scalar_lea.sflag [#allocation3], %s137
          %s139 = sand.u32 %s25, 1
          %s140 = smul.addr %s139, 128
          %s141 = scalar_lea.vmem [#allocation2], %s140
          %s143 = ssub.s32 2048, 2048
          %144 = vsyncadd %s138, %s143
          %s145 = smul.addr %s15, 64
          %s146 = smul.addr %s145, 32
          %s147 = scalar_lea.hbm %s0, %s146
          %s148 = sshll.u32 %s141, 4
          %s149 = int_to_ptr.vmem [resolvable:$true] %s148
          %154 = dma.hbm_to_vmem [thread:$0]  %s147, 2048, %s149, %s138, 64, 64, 4
        $region28: #{tpu_custom_call.1} parent=23 // pred_fallthru
          _
      $region24: #{tpu_custom_call.1} parent=5 // pred_fallthru
        _
      %p155 = scmp.le.s32.totalorder 1, %s15
      %p156 = scmp.lt.s32.totalorder %s15, 3
      %p157 = pnand %p155, %p156
      %p158 = pneg %p157
      // Predicated region
      $region29: #{tpu_custom_call.1} parent=5 // pred_check
        _
      $region30: #{tpu_custom_call.1} parent=5 // pred_check_branch
        %160 = sbr.rel (%p157) target = $region32
      $region31: #{tpu_custom_call.1} parent=5 // pred_region
        %s161 = ssub.s32 %s15, 1
        %s162 = sand.u32 %s28, 1
        %s163 = scalar_lea.sflag [#allocation3], %s162
        %s164 = sand.u32 %s28, 1
        %s165 = smul.addr %s164, 128
        %s166 = scalar_lea.vmem [#allocation2], %s165
        // Predicated region
        $region33: #{tpu_custom_call.1} parent=31 // pred_check
          %p167 = pneg %p41
        $region34: #{tpu_custom_call.1} parent=31 // pred_check_branch
          %169 = sbr.rel (%p167) target = $region36
        $region35: #{tpu_custom_call.1} parent=31 // pred_region
          %170 = dma.done %s163, 2048
        $region36: #{tpu_custom_call.1} parent=31 // pred_fallthru
          _
        %s171 = sand.u32 %s28, 1
        %s172 = scalar_lea.sflag [#allocation3], %s171
        %s173 = sand.u32 %s28, 1
        %s174 = smul.addr %s173, 128
        %s175 = scalar_lea.vmem [#allocation2], %s174
        %p176 = pneg %p41
        %p177 = pneg %p38
        %p178 = pneg %p62
        %p179 = pneg %p59
        %p180 = pneg %p83
        %p181 = pneg %p80
        %p182 = pneg %p109
        %p183 = pneg %p106
        %s184 = sand.u32 %s96, 1
        %s185 = scalar_lea.sflag [#allocation4], %s184
        %s186 = sand.u32 %s96, 1
        %s187 = smul.addr %s186, 128
        %s188 = scalar_lea.vmem [#allocation5], %s187
        %v189 = vld [vmem:[%s166] sm:$0xf]
        %v190 = vld [vmem:[%s166 + $0x4] sm:$0xf]
        %v191 = vld [vmem:[%s166 + $0x8] sm:$0xf]
        %v192 = vld [vmem:[%s166 + $0xc] sm:$0xf]
        %v193 = vld [vmem:[%s166 + $0x10] sm:$0xf]
        %v194 = vld [vmem:[%s166 + $0x14] sm:$0xf]
        %v195 = vld [vmem:[%s166 + $0x18] sm:$0xf]
        %v196 = vld [vmem:[%s166 + $0x1c] sm:$0xf]
        %v197 = vld [vmem:[%s166 + $0x20] sm:$0xf]
        %v198 = vld [vmem:[%s166 + $0x24] sm:$0xf]
        %v199 = vld [vmem:[%s166 + $0x28] sm:$0xf]
        %v200 = vld [vmem:[%s166 + $0x2c] sm:$0xf]
        %v201 = vld [vmem:[%s166 + $0x30] sm:$0xf]
        %v202 = vld [vmem:[%s166 + $0x34] sm:$0xf]
        %v203 = vld [vmem:[%s166 + $0x38] sm:$0xf]
        %v204 = vld [vmem:[%s166 + $0x3c] sm:$0xf]
        %v205 = vld [vmem:[%s166 + $0x40] sm:$0xf]
        %v206 = vld [vmem:[%s166 + $0x44] sm:$0xf]
        %v207 = vld [vmem:[%s166 + $0x48] sm:$0xf]
        %v208 = vld [vmem:[%s166 + $0x4c] sm:$0xf]
        %v209 = vld [vmem:[%s166 + $0x50] sm:$0xf]
        %v210 = vld [vmem:[%s166 + $0x54] sm:$0xf]
        %v211 = vld [vmem:[%s166 + $0x58] sm:$0xf]
        %v212 = vld [vmem:[%s166 + $0x5c] sm:$0xf]
        %v213 = vld [vmem:[%s166 + $0x60] sm:$0xf]
        %v214 = vld [vmem:[%s166 + $0x64] sm:$0xf]
        %v215 = vld [vmem:[%s166 + $0x68] sm:$0xf]
        %v216 = vld [vmem:[%s166 + $0x6c] sm:$0xf]
        %v217 = vld [vmem:[%s166 + $0x70] sm:$0xf]
        %v218 = vld [vmem:[%s166 + $0x74] sm:$0xf]
        %v219 = vld [vmem:[%s166 + $0x78] sm:$0xf]
        %v220 = vld [vmem:[%s166 + $0x7c] sm:$0xf]
        %v254 = vunpack.c.l.s4 1983009808
        %v255 = vunpack.c.0.s8 %v254
        %v256 = vlaneseq
        %v257 = vshrl.u32 %v256, 7
        %v258 = vsub.s32 %v255, %v257
        %v259 = vrot.slane %v189, %v258
        %v260 = vcombine.high %v259, %v259
        %v262 = vunpack.c.l.s4 1983009808
        %v263 = vunpack.c.0.s8 %v262
        %v264 = vlaneseq
        %v265 = vshrl.u32 %v264, 7
        %v266 = vsub.s32 %v263, %v265
        %v267 = vrot.slane %v190, %v266
        %v268 = vcombine.high %v267, %v267
        %v270 = vunpack.c.l.s4 1983009808
        %v271 = vunpack.c.0.s8 %v270
        %v272 = vlaneseq
        %v273 = vshrl.u32 %v272, 7
        %v274 = vsub.s32 %v271, %v273
        %v275 = vrot.slane %v191, %v274
        %v276 = vcombine.high %v275, %v275
        %v278 = vunpack.c.l.s4 1983009808
        %v279 = vunpack.c.0.s8 %v278
        %v280 = vlaneseq
        %v281 = vshrl.u32 %v280, 7
        %v282 = vsub.s32 %v279, %v281
        %v283 = vrot.slane %v192, %v282
        %v284 = vcombine.high %v283, %v283
        %v286 = vunpack.c.l.s4 1983009808
        %v287 = vunpack.c.0.s8 %v286
        %v288 = vlaneseq
        %v289 = vshrl.u32 %v288, 7
        %v290 = vsub.s32 %v287, %v289
        %v291 = vrot.slane %v193, %v290
        %v292 = vcombine.high %v291, %v291
        %v294 = vunpack.c.l.s4 1983009808
        %v295 = vunpack.c.0.s8 %v294
        %v296 = vlaneseq
        %v297 = vshrl.u32 %v296, 7
        %v298 = vsub.s32 %v295, %v297
        %v299 = vrot.slane %v194, %v298
        %v300 = vcombine.high %v299, %v299
        %v302 = vunpack.c.l.s4 1983009808
        %v303 = vunpack.c.0.s8 %v302
        %v304 = vlaneseq
        %v305 = vshrl.u32 %v304, 7
        %v306 = vsub.s32 %v303, %v305
        %v307 = vrot.slane %v195, %v306
        %v308 = vcombine.high %v307, %v307
        %v310 = vunpack.c.l.s4 1983009808
        %v311 = vunpack.c.0.s8 %v310
        %v312 = vlaneseq
        %v313 = vshrl.u32 %v312, 7
        %v314 = vsub.s32 %v311, %v313
        %v315 = vrot.slane %v196, %v314
        %v316 = vcombine.high %v315, %v315
        %v318 = vunpack.c.l.s4 1983009808
        %v319 = vunpack.c.0.s8 %v318
        %v320 = vlaneseq
        %v321 = vshrl.u32 %v320, 7
        %v322 = vsub.s32 %v319, %v321
        %v323 = vrot.slane %v197, %v322
        %v324 = vcombine.high %v323, %v323
        %v326 = vunpack.c.l.s4 1983009808
        %v327 = vunpack.c.0.s8 %v326
        %v328 = vlaneseq
        %v329 = vshrl.u32 %v328, 7
        %v330 = vsub.s32 %v327, %v329
        %v331 = vrot.slane %v198, %v330
        %v332 = vcombine.high %v331, %v331
        %v334 = vunpack.c.l.s4 1983009808
        %v335 = vunpack.c.0.s8 %v334
        %v336 = vlaneseq
        %v337 = vshrl.u32 %v336, 7
        %v338 = vsub.s32 %v335, %v337
        %v339 = vrot.slane %v199, %v338
        %v340 = vcombine.high %v339, %v339
        %v342 = vunpack.c.l.s4 1983009808
        %v343 = vunpack.c.0.s8 %v342
        %v344 = vlaneseq
        %v345 = vshrl.u32 %v344, 7
        %v346 = vsub.s32 %v343, %v345
        %v347 = vrot.slane %v200, %v346
        %v348 = vcombine.high %v347, %v347
        %v350 = vunpack.c.l.s4 1983009808
        %v351 = vunpack.c.0.s8 %v350
        %v352 = vlaneseq
        %v353 = vshrl.u32 %v352, 7
        %v354 = vsub.s32 %v351, %v353
        %v355 = vrot.slane %v201, %v354
        %v356 = vcombine.high %v355, %v355
        %v358 = vunpack.c.l.s4 1983009808
        %v359 = vunpack.c.0.s8 %v358
        %v360 = vlaneseq
        %v361 = vshrl.u32 %v360, 7
        %v362 = vsub.s32 %v359, %v361
        %v363 = vrot.slane %v202, %v362
        %v364 = vcombine.high %v363, %v363
        %v366 = vunpack.c.l.s4 1983009808
        %v367 = vunpack.c.0.s8 %v366
        %v368 = vlaneseq
        %v369 = vshrl.u32 %v368, 7
        %v370 = vsub.s32 %v367, %v369
        %v371 = vrot.slane %v203, %v370
        %v372 = vcombine.high %v371, %v371
        %v374 = vunpack.c.l.s4 1983009808
        %v375 = vunpack.c.0.s8 %v374
        %v376 = vlaneseq
        %v377 = vshrl.u32 %v376, 7
        %v378 = vsub.s32 %v375, %v377
        %v379 = vrot.slane %v204, %v378
        %v380 = vcombine.high %v379, %v379
        %v382 = vunpack.c.l.s4 1983009808
        %v383 = vunpack.c.0.s8 %v382
        %v384 = vlaneseq
        %v385 = vshrl.u32 %v384, 7
        %v386 = vsub.s32 %v383, %v385
        %v387 = vrot.slane %v205, %v386
        %v388 = vcombine.high %v387, %v387
        %v390 = vunpack.c.l.s4 1983009808
        %v391 = vunpack.c.0.s8 %v390
        %v392 = vlaneseq
        %v393 = vshrl.u32 %v392, 7
        %v394 = vsub.s32 %v391, %v393
        %v395 = vrot.slane %v206, %v394
        %v396 = vcombine.high %v395, %v395
        %v398 = vunpack.c.l.s4 1983009808
        %v399 = vunpack.c.0.s8 %v398
        %v400 = vlaneseq
        %v401 = vshrl.u32 %v400, 7
        %v402 = vsub.s32 %v399, %v401
        %v403 = vrot.slane %v207, %v402
        %v404 = vcombine.high %v403, %v403
        %v406 = vunpack.c.l.s4 1983009808
        %v407 = vunpack.c.0.s8 %v406
        %v408 = vlaneseq
        %v409 = vshrl.u32 %v408, 7
        %v410 = vsub.s32 %v407, %v409
        %v411 = vrot.slane %v208, %v410
        %v412 = vcombine.high %v411, %v411
        %v414 = vunpack.c.l.s4 1983009808
        %v415 = vunpack.c.0.s8 %v414
        %v416 = vlaneseq
        %v417 = vshrl.u32 %v416, 7
        %v418 = vsub.s32 %v415, %v417
        %v419 = vrot.slane %v209, %v418
        %v420 = vcombine.high %v419, %v419
        %v422 = vunpack.c.l.s4 1983009808
        %v423 = vunpack.c.0.s8 %v422
        %v424 = vlaneseq
        %v425 = vshrl.u32 %v424, 7
        %v426 = vsub.s32 %v423, %v425
        %v427 = vrot.slane %v210, %v426
        %v428 = vcombine.high %v427, %v427
        %v430 = vunpack.c.l.s4 1983009808
        %v431 = vunpack.c.0.s8 %v430
        %v432 = vlaneseq
        %v433 = vshrl.u32 %v432, 7
        %v434 = vsub.s32 %v431, %v433
        %v435 = vrot.slane %v211, %v434
        %v436 = vcombine.high %v435, %v435
        %v438 = vunpack.c.l.s4 1983009808
        %v439 = vunpack.c.0.s8 %v438
        %v440 = vlaneseq
        %v441 = vshrl.u32 %v440, 7
        %v442 = vsub.s32 %v439, %v441
        %v443 = vrot.slane %v212, %v442
        %v444 = vcombine.high %v443, %v443
        %v446 = vunpack.c.l.s4 1983009808
        %v447 = vunpack.c.0.s8 %v446
        %v448 = vlaneseq
        %v449 = vshrl.u32 %v448, 7
        %v450 = vsub.s32 %v447, %v449
        %v451 = vrot.slane %v213, %v450
        %v452 = vcombine.high %v451, %v451
        %v454 = vunpack.c.l.s4 1983009808
        %v455 = vunpack.c.0.s8 %v454
        %v456 = vlaneseq
        %v457 = vshrl.u32 %v456, 7
        %v458 = vsub.s32 %v455, %v457
        %v459 = vrot.slane %v214, %v458
        %v460 = vcombine.high %v459, %v459
        %v462 = vunpack.c.l.s4 1983009808
        %v463 = vunpack.c.0.s8 %v462
        %v464 = vlaneseq
        %v465 = vshrl.u32 %v464, 7
        %v466 = vsub.s32 %v463, %v465
        %v467 = vrot.slane %v215, %v466
        %v468 = vcombine.high %v467, %v467
        %v470 = vunpack.c.l.s4 1983009808
        %v471 = vunpack.c.0.s8 %v470
        %v472 = vlaneseq
        %v473 = vshrl.u32 %v472, 7
        %v474 = vsub.s32 %v471, %v473
        %v475 = vrot.slane %v216, %v474
        %v476 = vcombine.high %v475, %v475
        %v478 = vunpack.c.l.s4 1983009808
        %v479 = vunpack.c.0.s8 %v478
        %v480 = vlaneseq
        %v481 = vshrl.u32 %v480, 7
        %v482 = vsub.s32 %v479, %v481
        %v483 = vrot.slane %v217, %v482
        %v484 = vcombine.high %v483, %v483
        %v486 = vunpack.c.l.s4 1983009808
        %v487 = vunpack.c.0.s8 %v486
        %v488 = vlaneseq
        %v489 = vshrl.u32 %v488, 7
        %v490 = vsub.s32 %v487, %v489
        %v491 = vrot.slane %v218, %v490
        %v492 = vcombine.high %v491, %v491
        %v494 = vunpack.c.l.s4 1983009808
        %v495 = vunpack.c.0.s8 %v494
        %v496 = vlaneseq
        %v497 = vshrl.u32 %v496, 7
        %v498 = vsub.s32 %v495, %v497
        %v499 = vrot.slane %v219, %v498
        %v500 = vcombine.high %v499, %v499
        %v502 = vunpack.c.l.s4 1983009808
        %v503 = vunpack.c.0.s8 %v502
        %v504 = vlaneseq
        %v505 = vshrl.u32 %v504, 7
        %v506 = vsub.s32 %v503, %v505
        %v507 = vrot.slane %v220, %v506
        %v508 = vcombine.high %v507, %v507
        %vm573 = vcmask 1041408
        %v574 = vsel %vm573, %v259, 0.0
        %v575 = vsel %vm573, %v260, 0.0
        %v576 = vadd.f32 %v574, %v575
        %577 = vadd.xlane.f32.xlu0 %v576
        %v578 = vpop.xlane.xlu0 %577
        %v579 = vsel %vm573, %v267, 0.0
        %v580 = vsel %vm573, %v268, 0.0
        %v581 = vadd.f32 %v579, %v580
        %582 = vadd.xlane.f32.xlu0 %v581
        %v583 = vpop.xlane.xlu0 %582
        %v584 = vsel %vm573, %v275, 0.0
        %v585 = vsel %vm573, %v276, 0.0
        %v586 = vadd.f32 %v584, %v585
        %587 = vadd.xlane.f32.xlu0 %v586
        %v588 = vpop.xlane.xlu0 %587
        %v589 = vsel %vm573, %v283, 0.0
        %v590 = vsel %vm573, %v284, 0.0
        %v591 = vadd.f32 %v589, %v590
        %592 = vadd.xlane.f32.xlu0 %v591
        %v593 = vpop.xlane.xlu0 %592
        %v594 = vsel %vm573, %v291, 0.0
        %v595 = vsel %vm573, %v292, 0.0
        %v596 = vadd.f32 %v594, %v595
        %597 = vadd.xlane.f32.xlu0 %v596
        %v598 = vpop.xlane.xlu0 %597
        %v599 = vsel %vm573, %v299, 0.0
        %v600 = vsel %vm573, %v300, 0.0
        %v601 = vadd.f32 %v599, %v600
        %602 = vadd.xlane.f32.xlu0 %v601
        %v603 = vpop.xlane.xlu0 %602
        %v604 = vsel %vm573, %v307, 0.0
        %v605 = vsel %vm573, %v308, 0.0
        %v606 = vadd.f32 %v604, %v605
        %607 = vadd.xlane.f32.xlu0 %v606
        %v608 = vpop.xlane.xlu0 %607
        %v609 = vsel %vm573, %v315, 0.0
        %v610 = vsel %vm573, %v316, 0.0
        %v611 = vadd.f32 %v609, %v610
        %612 = vadd.xlane.f32.xlu0 %v611
        %v613 = vpop.xlane.xlu0 %612
        %v614 = vsel %vm573, %v323, 0.0
        %v615 = vsel %vm573, %v324, 0.0
        %v616 = vadd.f32 %v614, %v615
        %617 = vadd.xlane.f32.xlu0 %v616
        %v618 = vpop.xlane.xlu0 %617
        %v619 = vsel %vm573, %v331, 0.0
        %v620 = vsel %vm573, %v332, 0.0
        %v621 = vadd.f32 %v619, %v620
        %622 = vadd.xlane.f32.xlu0 %v621
        %v623 = vpop.xlane.xlu0 %622
        %v624 = vsel %vm573, %v339, 0.0
        %v625 = vsel %vm573, %v340, 0.0
        %v626 = vadd.f32 %v624, %v625
        %627 = vadd.xlane.f32.xlu0 %v626
        %v628 = vpop.xlane.xlu0 %627
        %v629 = vsel %vm573, %v347, 0.0
        %v630 = vsel %vm573, %v348, 0.0
        %v631 = vadd.f32 %v629, %v630
        %632 = vadd.xlane.f32.xlu0 %v631
        %v633 = vpop.xlane.xlu0 %632
        %v634 = vsel %vm573, %v355, 0.0
        %v635 = vsel %vm573, %v356, 0.0
        %v636 = vadd.f32 %v634, %v635
        %637 = vadd.xlane.f32.xlu0 %v636
        %v638 = vpop.xlane.xlu0 %637
        %v639 = vsel %vm573, %v363, 0.0
        %v640 = vsel %vm573, %v364, 0.0
        %v641 = vadd.f32 %v639, %v640
        %642 = vadd.xlane.f32.xlu0 %v641
        %v643 = vpop.xlane.xlu0 %642
        %v644 = vsel %vm573, %v371, 0.0
        %v645 = vsel %vm573, %v372, 0.0
        %v646 = vadd.f32 %v644, %v645
        %647 = vadd.xlane.f32.xlu0 %v646
        %v648 = vpop.xlane.xlu0 %647
        %v649 = vsel %vm573, %v379, 0.0
        %v650 = vsel %vm573, %v380, 0.0
        %v651 = vadd.f32 %v649, %v650
        %652 = vadd.xlane.f32.xlu0 %v651
        %v653 = vpop.xlane.xlu0 %652
        %v654 = vsel %vm573, %v387, 0.0
        %v655 = vsel %vm573, %v388, 0.0
        %v656 = vadd.f32 %v654, %v655
        %657 = vadd.xlane.f32.xlu0 %v656
        %v658 = vpop.xlane.xlu0 %657
        %v659 = vsel %vm573, %v395, 0.0
        %v660 = vsel %vm573, %v396, 0.0
        %v661 = vadd.f32 %v659, %v660
        %662 = vadd.xlane.f32.xlu0 %v661
        %v663 = vpop.xlane.xlu0 %662
        %v664 = vsel %vm573, %v403, 0.0
        %v665 = vsel %vm573, %v404, 0.0
        %v666 = vadd.f32 %v664, %v665
        %667 = vadd.xlane.f32.xlu0 %v666
        %v668 = vpop.xlane.xlu0 %667
        %v669 = vsel %vm573, %v411, 0.0
        %v670 = vsel %vm573, %v412, 0.0
        %v671 = vadd.f32 %v669, %v670
        %672 = vadd.xlane.f32.xlu0 %v671
        %v673 = vpop.xlane.xlu0 %672
        %v674 = vsel %vm573, %v419, 0.0
        %v675 = vsel %vm573, %v420, 0.0
        %v676 = vadd.f32 %v674, %v675
        %677 = vadd.xlane.f32.xlu0 %v676
        %v678 = vpop.xlane.xlu0 %677
        %v679 = vsel %vm573, %v427, 0.0
        %v680 = vsel %vm573, %v428, 0.0
        %v681 = vadd.f32 %v679, %v680
        %682 = vadd.xlane.f32.xlu0 %v681
        %v683 = vpop.xlane.xlu0 %682
        %v684 = vsel %vm573, %v435, 0.0
        %v685 = vsel %vm573, %v436, 0.0
        %v686 = vadd.f32 %v684, %v685
        %687 = vadd.xlane.f32.xlu0 %v686
        %v688 = vpop.xlane.xlu0 %687
        %v689 = vsel %vm573, %v443, 0.0
        %v690 = vsel %vm573, %v444, 0.0
        %v691 = vadd.f32 %v689, %v690
        %692 = vadd.xlane.f32.xlu0 %v691
        %v693 = vpop.xlane.xlu0 %692
        %v694 = vsel %vm573, %v451, 0.0
        %v695 = vsel %vm573, %v452, 0.0
        %v696 = vadd.f32 %v694, %v695
        %697 = vadd.xlane.f32.xlu0 %v696
        %v698 = vpop.xlane.xlu0 %697
        %v699 = vsel %vm573, %v459, 0.0
        %v700 = vsel %vm573, %v460, 0.0
        %v701 = vadd.f32 %v699, %v700
        %702 = vadd.xlane.f32.xlu0 %v701
        %v703 = vpop.xlane.xlu0 %702
        %v704 = vsel %vm573, %v467, 0.0
        %v705 = vsel %vm573, %v468, 0.0
        %v706 = vadd.f32 %v704, %v705
        %707 = vadd.xlane.f32.xlu0 %v706
        %v708 = vpop.xlane.xlu0 %707
        %v709 = vsel %vm573, %v475, 0.0
        %v710 = vsel %vm573, %v476, 0.0
        %v711 = vadd.f32 %v709, %v710
        %712 = vadd.xlane.f32.xlu0 %v711
        %v713 = vpop.xlane.xlu0 %712
        %v714 = vsel %vm573, %v483, 0.0
        %v715 = vsel %vm573, %v484, 0.0
        %v716 = vadd.f32 %v714, %v715
        %717 = vadd.xlane.f32.xlu0 %v716
        %v718 = vpop.xlane.xlu0 %717
        %v719 = vsel %vm573, %v491, 0.0
        %v720 = vsel %vm573, %v492, 0.0
        %v721 = vadd.f32 %v719, %v720
        %722 = vadd.xlane.f32.xlu0 %v721
        %v723 = vpop.xlane.xlu0 %722
        %v724 = vsel %vm573, %v499, 0.0
        %v725 = vsel %vm573, %v500, 0.0
        %v726 = vadd.f32 %v724, %v725
        %727 = vadd.xlane.f32.xlu0 %v726
        %v728 = vpop.xlane.xlu0 %727
        %v729 = vsel %vm573, %v507, 0.0
        %v730 = vsel %vm573, %v508, 0.0
        %v731 = vadd.f32 %v729, %v730
        %732 = vadd.xlane.f32.xlu0 %v731
        %v733 = vpop.xlane.xlu0 %732
        %v734 = vsel %vm573, %v578, 0.0
        %v735 = vrot.slane %v734, 4
        %v736 = vadd.f32 %v734, %v735
        %v737 = vrot.slane %v736, 2
        %v738 = vadd.f32 %v736, %v737
        %v739 = vrot.slane %v738, 1
        %v740 = vadd.f32 %v738, %v739
        %v741 = vsel %vm573, %v583, 0.0
        %v742 = vrot.slane %v741, 4
        %v743 = vadd.f32 %v741, %v742
        %v744 = vrot.slane %v743, 2
        %v745 = vadd.f32 %v743, %v744
        %v746 = vrot.slane %v745, 1
        %v747 = vadd.f32 %v745, %v746
        %v748 = vsel %vm573, %v588, 0.0
        %v749 = vrot.slane %v748, 4
        %v750 = vadd.f32 %v748, %v749
        %v751 = vrot.slane %v750, 2
        %v752 = vadd.f32 %v750, %v751
        %v753 = vrot.slane %v752, 1
        %v754 = vadd.f32 %v752, %v753
        %v755 = vsel %vm573, %v593, 0.0
        %v756 = vrot.slane %v755, 4
        %v757 = vadd.f32 %v755, %v756
        %v758 = vrot.slane %v757, 2
        %v759 = vadd.f32 %v757, %v758
        %v760 = vrot.slane %v759, 1
        %v761 = vadd.f32 %v759, %v760
        %v762 = vsel %vm573, %v598, 0.0
        %v763 = vrot.slane %v762, 4
        %v764 = vadd.f32 %v762, %v763
        %v765 = vrot.slane %v764, 2
        %v766 = vadd.f32 %v764, %v765
        %v767 = vrot.slane %v766, 1
        %v768 = vadd.f32 %v766, %v767
        %v769 = vsel %vm573, %v603, 0.0
        %v770 = vrot.slane %v769, 4
        %v771 = vadd.f32 %v769, %v770
        %v772 = vrot.slane %v771, 2
        %v773 = vadd.f32 %v771, %v772
        %v774 = vrot.slane %v773, 1
        %v775 = vadd.f32 %v773, %v774
        %v776 = vsel %vm573, %v608, 0.0
        %v777 = vrot.slane %v776, 4
        %v778 = vadd.f32 %v776, %v777
        %v779 = vrot.slane %v778, 2
        %v780 = vadd.f32 %v778, %v779
        %v781 = vrot.slane %v780, 1
        %v782 = vadd.f32 %v780, %v781
        %v783 = vsel %vm573, %v613, 0.0
        %v784 = vrot.slane %v783, 4
        %v785 = vadd.f32 %v783, %v784
        %v786 = vrot.slane %v785, 2
        %v787 = vadd.f32 %v785, %v786
        %v788 = vrot.slane %v787, 1
        %v789 = vadd.f32 %v787, %v788
        %v790 = vsel %vm573, %v618, 0.0
        %v791 = vrot.slane %v790, 4
        %v792 = vadd.f32 %v790, %v791
        %v793 = vrot.slane %v792, 2
        %v794 = vadd.f32 %v792, %v793
        %v795 = vrot.slane %v794, 1
        %v796 = vadd.f32 %v794, %v795
        %v797 = vsel %vm573, %v623, 0.0
        %v798 = vrot.slane %v797, 4
        %v799 = vadd.f32 %v797, %v798
        %v800 = vrot.slane %v799, 2
        %v801 = vadd.f32 %v799, %v800
        %v802 = vrot.slane %v801, 1
        %v803 = vadd.f32 %v801, %v802
        %v804 = vsel %vm573, %v628, 0.0
        %v805 = vrot.slane %v804, 4
        %v806 = vadd.f32 %v804, %v805
        %v807 = vrot.slane %v806, 2
        %v808 = vadd.f32 %v806, %v807
        %v809 = vrot.slane %v808, 1
        %v810 = vadd.f32 %v808, %v809
        %v811 = vsel %vm573, %v633, 0.0
        %v812 = vrot.slane %v811, 4
        %v813 = vadd.f32 %v811, %v812
        %v814 = vrot.slane %v813, 2
        %v815 = vadd.f32 %v813, %v814
        %v816 = vrot.slane %v815, 1
        %v817 = vadd.f32 %v815, %v816
        %v818 = vsel %vm573, %v638, 0.0
        %v819 = vrot.slane %v818, 4
        %v820 = vadd.f32 %v818, %v819
        %v821 = vrot.slane %v820, 2
        %v822 = vadd.f32 %v820, %v821
        %v823 = vrot.slane %v822, 1
        %v824 = vadd.f32 %v822, %v823
        %v825 = vsel %vm573, %v643, 0.0
        %v826 = vrot.slane %v825, 4
        %v827 = vadd.f32 %v825, %v826
        %v828 = vrot.slane %v827, 2
        %v829 = vadd.f32 %v827, %v828
        %v830 = vrot.slane %v829, 1
        %v831 = vadd.f32 %v829, %v830
        %v832 = vsel %vm573, %v648, 0.0
        %v833 = vrot.slane %v832, 4
        %v834 = vadd.f32 %v832, %v833
        %v835 = vrot.slane %v834, 2
        %v836 = vadd.f32 %v834, %v835
        %v837 = vrot.slane %v836, 1
        %v838 = vadd.f32 %v836, %v837
        %v839 = vsel %vm573, %v653, 0.0
        %v840 = vrot.slane %v839, 4
        %v841 = vadd.f32 %v839, %v840
        %v842 = vrot.slane %v841, 2
        %v843 = vadd.f32 %v841, %v842
        %v844 = vrot.slane %v843, 1
        %v845 = vadd.f32 %v843, %v844
        %v846 = vsel %vm573, %v658, 0.0
        %v847 = vrot.slane %v846, 4
        %v848 = vadd.f32 %v846, %v847
        %v849 = vrot.slane %v848, 2
        %v850 = vadd.f32 %v848, %v849
        %v851 = vrot.slane %v850, 1
        %v852 = vadd.f32 %v850, %v851
        %v853 = vsel %vm573, %v663, 0.0
        %v854 = vrot.slane %v853, 4
        %v855 = vadd.f32 %v853, %v854
        %v856 = vrot.slane %v855, 2
        %v857 = vadd.f32 %v855, %v856
        %v858 = vrot.slane %v857, 1
        %v859 = vadd.f32 %v857, %v858
        %v860 = vsel %vm573, %v668, 0.0
        %v861 = vrot.slane %v860, 4
        %v862 = vadd.f32 %v860, %v861
        %v863 = vrot.slane %v862, 2
        %v864 = vadd.f32 %v862, %v863
        %v865 = vrot.slane %v864, 1
        %v866 = vadd.f32 %v864, %v865
        %v867 = vsel %vm573, %v673, 0.0
        %v868 = vrot.slane %v867, 4
        %v869 = vadd.f32 %v867, %v868
        %v870 = vrot.slane %v869, 2
        %v871 = vadd.f32 %v869, %v870
        %v872 = vrot.slane %v871, 1
        %v873 = vadd.f32 %v871, %v872
        %v874 = vsel %vm573, %v678, 0.0
        %v875 = vrot.slane %v874, 4
        %v876 = vadd.f32 %v874, %v875
        %v877 = vrot.slane %v876, 2
        %v878 = vadd.f32 %v876, %v877
        %v879 = vrot.slane %v878, 1
        %v880 = vadd.f32 %v878, %v879
        %v881 = vsel %vm573, %v683, 0.0
        %v882 = vrot.slane %v881, 4
        %v883 = vadd.f32 %v881, %v882
        %v884 = vrot.slane %v883, 2
        %v885 = vadd.f32 %v883, %v884
        %v886 = vrot.slane %v885, 1
        %v887 = vadd.f32 %v885, %v886
        %v888 = vsel %vm573, %v688, 0.0
        %v889 = vrot.slane %v888, 4
        %v890 = vadd.f32 %v888, %v889
        %v891 = vrot.slane %v890, 2
        %v892 = vadd.f32 %v890, %v891
        %v893 = vrot.slane %v892, 1
        %v894 = vadd.f32 %v892, %v893
        %v895 = vsel %vm573, %v693, 0.0
        %v896 = vrot.slane %v895, 4
        %v897 = vadd.f32 %v895, %v896
        %v898 = vrot.slane %v897, 2
        %v899 = vadd.f32 %v897, %v898
        %v900 = vrot.slane %v899, 1
        %v901 = vadd.f32 %v899, %v900
        %v902 = vsel %vm573, %v698, 0.0
        %v903 = vrot.slane %v902, 4
        %v904 = vadd.f32 %v902, %v903
        %v905 = vrot.slane %v904, 2
        %v906 = vadd.f32 %v904, %v905
        %v907 = vrot.slane %v906, 1
        %v908 = vadd.f32 %v906, %v907
        %v909 = vsel %vm573, %v703, 0.0
        %v910 = vrot.slane %v909, 4
        %v911 = vadd.f32 %v909, %v910
        %v912 = vrot.slane %v911, 2
        %v913 = vadd.f32 %v911, %v912
        %v914 = vrot.slane %v913, 1
        %v915 = vadd.f32 %v913, %v914
        %v916 = vsel %vm573, %v708, 0.0
        %v917 = vrot.slane %v916, 4
        %v918 = vadd.f32 %v916, %v917
        %v919 = vrot.slane %v918, 2
        %v920 = vadd.f32 %v918, %v919
        %v921 = vrot.slane %v920, 1
        %v922 = vadd.f32 %v920, %v921
        %v923 = vsel %vm573, %v713, 0.0
        %v924 = vrot.slane %v923, 4
        %v925 = vadd.f32 %v923, %v924
        %v926 = vrot.slane %v925, 2
        %v927 = vadd.f32 %v925, %v926
        %v928 = vrot.slane %v927, 1
        %v929 = vadd.f32 %v927, %v928
        %v930 = vsel %vm573, %v718, 0.0
        %v931 = vrot.slane %v930, 4
        %v932 = vadd.f32 %v930, %v931
        %v933 = vrot.slane %v932, 2
        %v934 = vadd.f32 %v932, %v933
        %v935 = vrot.slane %v934, 1
        %v936 = vadd.f32 %v934, %v935
        %v937 = vsel %vm573, %v723, 0.0
        %v938 = vrot.slane %v937, 4
        %v939 = vadd.f32 %v937, %v938
        %v940 = vrot.slane %v939, 2
        %v941 = vadd.f32 %v939, %v940
        %v942 = vrot.slane %v941, 1
        %v943 = vadd.f32 %v941, %v942
        %v944 = vsel %vm573, %v728, 0.0
        %v945 = vrot.slane %v944, 4
        %v946 = vadd.f32 %v944, %v945
        %v947 = vrot.slane %v946, 2
        %v948 = vadd.f32 %v946, %v947
        %v949 = vrot.slane %v948, 1
        %v950 = vadd.f32 %v948, %v949
        %v951 = vsel %vm573, %v733, 0.0
        %v952 = vrot.slane %v951, 4
        %v953 = vadd.f32 %v951, %v952
        %v954 = vrot.slane %v953, 2
        %v955 = vadd.f32 %v953, %v954
        %v956 = vrot.slane %v955, 1
        %v957 = vadd.f32 %v955, %v956
        %v958 = vmul.f32 %v189, %v189
        %v959 = vmul.f32 %v190, %v190
        %v960 = vmul.f32 %v191, %v191
        %v961 = vmul.f32 %v192, %v192
        %v962 = vmul.f32 %v193, %v193
        %v963 = vmul.f32 %v194, %v194
        %v964 = vmul.f32 %v195, %v195
        %v965 = vmul.f32 %v196, %v196
        %v966 = vmul.f32 %v197, %v197
        %v967 = vmul.f32 %v198, %v198
        %v968 = vmul.f32 %v199, %v199
        %v969 = vmul.f32 %v200, %v200
        %v970 = vmul.f32 %v201, %v201
        %v971 = vmul.f32 %v202, %v202
        %v972 = vmul.f32 %v203, %v203
        %v973 = vmul.f32 %v204, %v204
        %v974 = vmul.f32 %v205, %v205
        %v975 = vmul.f32 %v206, %v206
        %v976 = vmul.f32 %v207, %v207
        %v977 = vmul.f32 %v208, %v208
        %v978 = vmul.f32 %v209, %v209
        %v979 = vmul.f32 %v210, %v210
        %v980 = vmul.f32 %v211, %v211
        %v981 = vmul.f32 %v212, %v212
        %v982 = vmul.f32 %v213, %v213
        %v983 = vmul.f32 %v214, %v214
        %v984 = vmul.f32 %v215, %v215
        %v985 = vmul.f32 %v216, %v216
        %v986 = vmul.f32 %v217, %v217
        %v987 = vmul.f32 %v218, %v218
        %v988 = vmul.f32 %v219, %v219
        %v989 = vmul.f32 %v220, %v220
        %v1023 = vunpack.c.l.s4 1983009808
        %v1024 = vunpack.c.0.s8 %v1023
        %v1025 = vlaneseq
        %v1026 = vshrl.u32 %v1025, 7
        %v1027 = vsub.s32 %v1024, %v1026
        %v1028 = vrot.slane %v958, %v1027
        %v1029 = vcombine.high %v1028, %v1028
        %v1031 = vunpack.c.l.s4 1983009808
        %v1032 = vunpack.c.0.s8 %v1031
        %v1033 = vlaneseq
        %v1034 = vshrl.u32 %v1033, 7
        %v1035 = vsub.s32 %v1032, %v1034
        %v1036 = vrot.slane %v959, %v1035
        %v1037 = vcombine.high %v1036, %v1036
        %v1039 = vunpack.c.l.s4 1983009808
        %v1040 = vunpack.c.0.s8 %v1039
        %v1041 = vlaneseq
        %v1042 = vshrl.u32 %v1041, 7
        %v1043 = vsub.s32 %v1040, %v1042
        %v1044 = vrot.slane %v960, %v1043
        %v1045 = vcombine.high %v1044, %v1044
        %v1047 = vunpack.c.l.s4 1983009808
        %v1048 = vunpack.c.0.s8 %v1047
        %v1049 = vlaneseq
        %v1050 = vshrl.u32 %v1049, 7
        %v1051 = vsub.s32 %v1048, %v1050
        %v1052 = vrot.slane %v961, %v1051
        %v1053 = vcombine.high %v1052, %v1052
        %v1055 = vunpack.c.l.s4 1983009808
        %v1056 = vunpack.c.0.s8 %v1055
        %v1057 = vlaneseq
        %v1058 = vshrl.u32 %v1057, 7
        %v1059 = vsub.s32 %v1056, %v1058
        %v1060 = vrot.slane %v962, %v1059
        %v1061 = vcombine.high %v1060, %v1060
        %v1063 = vunpack.c.l.s4 1983009808
        %v1064 = vunpack.c.0.s8 %v1063
        %v1065 = vlaneseq
        %v1066 = vshrl.u32 %v1065, 7
        %v1067 = vsub.s32 %v1064, %v1066
        %v1068 = vrot.slane %v963, %v1067
        %v1069 = vcombine.high %v1068, %v1068
        %v1071 = vunpack.c.l.s4 1983009808
        %v1072 = vunpack.c.0.s8 %v1071
        %v1073 = vlaneseq
        %v1074 = vshrl.u32 %v1073, 7
        %v1075 = vsub.s32 %v1072, %v1074
        %v1076 = vrot.slane %v964, %v1075
        %v1077 = vcombine.high %v1076, %v1076
        %v1079 = vunpack.c.l.s4 1983009808
        %v1080 = vunpack.c.0.s8 %v1079
        %v1081 = vlaneseq
        %v1082 = vshrl.u32 %v1081, 7
        %v1083 = vsub.s32 %v1080, %v1082
        %v1084 = vrot.slane %v965, %v1083
        %v1085 = vcombine.high %v1084, %v1084
        %v1087 = vunpack.c.l.s4 1983009808
        %v1088 = vunpack.c.0.s8 %v1087
        %v1089 = vlaneseq
        %v1090 = vshrl.u32 %v1089, 7
        %v1091 = vsub.s32 %v1088, %v1090
        %v1092 = vrot.slane %v966, %v1091
        %v1093 = vcombine.high %v1092, %v1092
        %v1095 = vunpack.c.l.s4 1983009808
        %v1096 = vunpack.c.0.s8 %v1095
        %v1097 = vlaneseq
        %v1098 = vshrl.u32 %v1097, 7
        %v1099 = vsub.s32 %v1096, %v1098
        %v1100 = vrot.slane %v967, %v1099
        %v1101 = vcombine.high %v1100, %v1100
        %v1103 = vunpack.c.l.s4 1983009808
        %v1104 = vunpack.c.0.s8 %v1103
        %v1105 = vlaneseq
        %v1106 = vshrl.u32 %v1105, 7
        %v1107 = vsub.s32 %v1104, %v1106
        %v1108 = vrot.slane %v968, %v1107
        %v1109 = vcombine.high %v1108, %v1108
        %v1111 = vunpack.c.l.s4 1983009808
        %v1112 = vunpack.c.0.s8 %v1111
        %v1113 = vlaneseq
        %v1114 = vshrl.u32 %v1113, 7
        %v1115 = vsub.s32 %v1112, %v1114
        %v1116 = vrot.slane %v969, %v1115
        %v1117 = vcombine.high %v1116, %v1116
        %v1119 = vunpack.c.l.s4 1983009808
        %v1120 = vunpack.c.0.s8 %v1119
        %v1121 = vlaneseq
        %v1122 = vshrl.u32 %v1121, 7
        %v1123 = vsub.s32 %v1120, %v1122
        %v1124 = vrot.slane %v970, %v1123
        %v1125 = vcombine.high %v1124, %v1124
        %v1127 = vunpack.c.l.s4 1983009808
        %v1128 = vunpack.c.0.s8 %v1127
        %v1129 = vlaneseq
        %v1130 = vshrl.u32 %v1129, 7
        %v1131 = vsub.s32 %v1128, %v1130
        %v1132 = vrot.slane %v971, %v1131
        %v1133 = vcombine.high %v1132, %v1132
        %v1135 = vunpack.c.l.s4 1983009808
        %v1136 = vunpack.c.0.s8 %v1135
        %v1137 = vlaneseq
        %v1138 = vshrl.u32 %v1137, 7
        %v1139 = vsub.s32 %v1136, %v1138
        %v1140 = vrot.slane %v972, %v1139
        %v1141 = vcombine.high %v1140, %v1140
        %v1143 = vunpack.c.l.s4 1983009808
        %v1144 = vunpack.c.0.s8 %v1143
        %v1145 = vlaneseq
        %v1146 = vshrl.u32 %v1145, 7
        %v1147 = vsub.s32 %v1144, %v1146
        %v1148 = vrot.slane %v973, %v1147
        %v1149 = vcombine.high %v1148, %v1148
        %v1151 = vunpack.c.l.s4 1983009808
        %v1152 = vunpack.c.0.s8 %v1151
        %v1153 = vlaneseq
        %v1154 = vshrl.u32 %v1153, 7
        %v1155 = vsub.s32 %v1152, %v1154
        %v1156 = vrot.slane %v974, %v1155
        %v1157 = vcombine.high %v1156, %v1156
        %v1159 = vunpack.c.l.s4 1983009808
        %v1160 = vunpack.c.0.s8 %v1159
        %v1161 = vlaneseq
        %v1162 = vshrl.u32 %v1161, 7
        %v1163 = vsub.s32 %v1160, %v1162
        %v1164 = vrot.slane %v975, %v1163
        %v1165 = vcombine.high %v1164, %v1164
        %v1167 = vunpack.c.l.s4 1983009808
        %v1168 = vunpack.c.0.s8 %v1167
        %v1169 = vlaneseq
        %v1170 = vshrl.u32 %v1169, 7
        %v1171 = vsub.s32 %v1168, %v1170
        %v1172 = vrot.slane %v976, %v1171
        %v1173 = vcombine.high %v1172, %v1172
        %v1175 = vunpack.c.l.s4 1983009808
        %v1176 = vunpack.c.0.s8 %v1175
        %v1177 = vlaneseq
        %v1178 = vshrl.u32 %v1177, 7
        %v1179 = vsub.s32 %v1176, %v1178
        %v1180 = vrot.slane %v977, %v1179
        %v1181 = vcombine.high %v1180, %v1180
        %v1183 = vunpack.c.l.s4 1983009808
        %v1184 = vunpack.c.0.s8 %v1183
        %v1185 = vlaneseq
        %v1186 = vshrl.u32 %v1185, 7
        %v1187 = vsub.s32 %v1184, %v1186
        %v1188 = vrot.slane %v978, %v1187
        %v1189 = vcombine.high %v1188, %v1188
        %v1191 = vunpack.c.l.s4 1983009808
        %v1192 = vunpack.c.0.s8 %v1191
        %v1193 = vlaneseq
        %v1194 = vshrl.u32 %v1193, 7
        %v1195 = vsub.s32 %v1192, %v1194
        %v1196 = vrot.slane %v979, %v1195
        %v1197 = vcombine.high %v1196, %v1196
        %v1199 = vunpack.c.l.s4 1983009808
        %v1200 = vunpack.c.0.s8 %v1199
        %v1201 = vlaneseq
        %v1202 = vshrl.u32 %v1201, 7
        %v1203 = vsub.s32 %v1200, %v1202
        %v1204 = vrot.slane %v980, %v1203
        %v1205 = vcombine.high %v1204, %v1204
        %v1207 = vunpack.c.l.s4 1983009808
        %v1208 = vunpack.c.0.s8 %v1207
        %v1209 = vlaneseq
        %v1210 = vshrl.u32 %v1209, 7
        %v1211 = vsub.s32 %v1208, %v1210
        %v1212 = vrot.slane %v981, %v1211
        %v1213 = vcombine.high %v1212, %v1212
        %v1215 = vunpack.c.l.s4 1983009808
        %v1216 = vunpack.c.0.s8 %v1215
        %v1217 = vlaneseq
        %v1218 = vshrl.u32 %v1217, 7
        %v1219 = vsub.s32 %v1216, %v1218
        %v1220 = vrot.slane %v982, %v1219
        %v1221 = vcombine.high %v1220, %v1220
        %v1223 = vunpack.c.l.s4 1983009808
        %v1224 = vunpack.c.0.s8 %v1223
        %v1225 = vlaneseq
        %v1226 = vshrl.u32 %v1225, 7
        %v1227 = vsub.s32 %v1224, %v1226
        %v1228 = vrot.slane %v983, %v1227
        %v1229 = vcombine.high %v1228, %v1228
        %v1231 = vunpack.c.l.s4 1983009808
        %v1232 = vunpack.c.0.s8 %v1231
        %v1233 = vlaneseq
        %v1234 = vshrl.u32 %v1233, 7
        %v1235 = vsub.s32 %v1232, %v1234
        %v1236 = vrot.slane %v984, %v1235
        %v1237 = vcombine.high %v1236, %v1236
        %v1239 = vunpack.c.l.s4 1983009808
        %v1240 = vunpack.c.0.s8 %v1239
        %v1241 = vlaneseq
        %v1242 = vshrl.u32 %v1241, 7
        %v1243 = vsub.s32 %v1240, %v1242
        %v1244 = vrot.slane %v985, %v1243
        %v1245 = vcombine.high %v1244, %v1244
        %v1247 = vunpack.c.l.s4 1983009808
        %v1248 = vunpack.c.0.s8 %v1247
        %v1249 = vlaneseq
        %v1250 = vshrl.u32 %v1249, 7
        %v1251 = vsub.s32 %v1248, %v1250
        %v1252 = vrot.slane %v986, %v1251
        %v1253 = vcombine.high %v1252, %v1252
        %v1255 = vunpack.c.l.s4 1983009808
        %v1256 = vunpack.c.0.s8 %v1255
        %v1257 = vlaneseq
        %v1258 = vshrl.u32 %v1257, 7
        %v1259 = vsub.s32 %v1256, %v1258
        %v1260 = vrot.slane %v987, %v1259
        %v1261 = vcombine.high %v1260, %v1260
        %v1263 = vunpack.c.l.s4 1983009808
        %v1264 = vunpack.c.0.s8 %v1263
        %v1265 = vlaneseq
        %v1266 = vshrl.u32 %v1265, 7
        %v1267 = vsub.s32 %v1264, %v1266
        %v1268 = vrot.slane %v988, %v1267
        %v1269 = vcombine.high %v1268, %v1268
        %v1271 = vunpack.c.l.s4 1983009808
        %v1272 = vunpack.c.0.s8 %v1271
        %v1273 = vlaneseq
        %v1274 = vshrl.u32 %v1273, 7
        %v1275 = vsub.s32 %v1272, %v1274
        %v1276 = vrot.slane %v989, %v1275
        %v1277 = vcombine.high %v1276, %v1276
        %v1342 = vsel %vm573, %v1028, 0.0
        %v1343 = vsel %vm573, %v1029, 0.0
        %v1344 = vadd.f32 %v1342, %v1343
        %1345 = vadd.xlane.f32.xlu0 %v1344
        %v1346 = vpop.xlane.xlu0 %1345
        %v1347 = vsel %vm573, %v1036, 0.0
        %v1348 = vsel %vm573, %v1037, 0.0
        %v1349 = vadd.f32 %v1347, %v1348
        %1350 = vadd.xlane.f32.xlu0 %v1349
        %v1351 = vpop.xlane.xlu0 %1350
        %v1352 = vsel %vm573, %v1044, 0.0
        %v1353 = vsel %vm573, %v1045, 0.0
        %v1354 = vadd.f32 %v1352, %v1353
        %1355 = vadd.xlane.f32.xlu0 %v1354
        %v1356 = vpop.xlane.xlu0 %1355
        %v1357 = vsel %vm573, %v1052, 0.0
        %v1358 = vsel %vm573, %v1053, 0.0
        %v1359 = vadd.f32 %v1357, %v1358
        %1360 = vadd.xlane.f32.xlu0 %v1359
        %v1361 = vpop.xlane.xlu0 %1360
        %v1362 = vsel %vm573, %v1060, 0.0
        %v1363 = vsel %vm573, %v1061, 0.0
        %v1364 = vadd.f32 %v1362, %v1363
        %1365 = vadd.xlane.f32.xlu0 %v1364
        %v1366 = vpop.xlane.xlu0 %1365
        %v1367 = vsel %vm573, %v1068, 0.0
        %v1368 = vsel %vm573, %v1069, 0.0
        %v1369 = vadd.f32 %v1367, %v1368
        %1370 = vadd.xlane.f32.xlu0 %v1369
        %v1371 = vpop.xlane.xlu0 %1370
        %v1372 = vsel %vm573, %v1076, 0.0
        %v1373 = vsel %vm573, %v1077, 0.0
        %v1374 = vadd.f32 %v1372, %v1373
        %1375 = vadd.xlane.f32.xlu0 %v1374
        %v1376 = vpop.xlane.xlu0 %1375
        %v1377 = vsel %vm573, %v1084, 0.0
        %v1378 = vsel %vm573, %v1085, 0.0
        %v1379 = vadd.f32 %v1377, %v1378
        %1380 = vadd.xlane.f32.xlu0 %v1379
        %v1381 = vpop.xlane.xlu0 %1380
        %v1382 = vsel %vm573, %v1092, 0.0
        %v1383 = vsel %vm573, %v1093, 0.0
        %v1384 = vadd.f32 %v1382, %v1383
        %1385 = vadd.xlane.f32.xlu0 %v1384
        %v1386 = vpop.xlane.xlu0 %1385
        %v1387 = vsel %vm573, %v1100, 0.0
        %v1388 = vsel %vm573, %v1101, 0.0
        %v1389 = vadd.f32 %v1387, %v1388
        %1390 = vadd.xlane.f32.xlu0 %v1389
        %v1391 = vpop.xlane.xlu0 %1390
        %v1392 = vsel %vm573, %v1108, 0.0
        %v1393 = vsel %vm573, %v1109, 0.0
        %v1394 = vadd.f32 %v1392, %v1393
        %1395 = vadd.xlane.f32.xlu0 %v1394
        %v1396 = vpop.xlane.xlu0 %1395
        %v1397 = vsel %vm573, %v1116, 0.0
        %v1398 = vsel %vm573, %v1117, 0.0
        %v1399 = vadd.f32 %v1397, %v1398
        %1400 = vadd.xlane.f32.xlu0 %v1399
        %v1401 = vpop.xlane.xlu0 %1400
        %v1402 = vsel %vm573, %v1124, 0.0
        %v1403 = vsel %vm573, %v1125, 0.0
        %v1404 = vadd.f32 %v1402, %v1403
        %1405 = vadd.xlane.f32.xlu0 %v1404
        %v1406 = vpop.xlane.xlu0 %1405
        %v1407 = vsel %vm573, %v1132, 0.0
        %v1408 = vsel %vm573, %v1133, 0.0
        %v1409 = vadd.f32 %v1407, %v1408
        %1410 = vadd.xlane.f32.xlu0 %v1409
        %v1411 = vpop.xlane.xlu0 %1410
        %v1412 = vsel %vm573, %v1140, 0.0
        %v1413 = vsel %vm573, %v1141, 0.0
        %v1414 = vadd.f32 %v1412, %v1413
        %1415 = vadd.xlane.f32.xlu0 %v1414
        %v1416 = vpop.xlane.xlu0 %1415
        %v1417 = vsel %vm573, %v1148, 0.0
        %v1418 = vsel %vm573, %v1149, 0.0
        %v1419 = vadd.f32 %v1417, %v1418
        %1420 = vadd.xlane.f32.xlu0 %v1419
        %v1421 = vpop.xlane.xlu0 %1420
        %v1422 = vsel %vm573, %v1156, 0.0
        %v1423 = vsel %vm573, %v1157, 0.0
        %v1424 = vadd.f32 %v1422, %v1423
        %1425 = vadd.xlane.f32.xlu0 %v1424
        %v1426 = vpop.xlane.xlu0 %1425
        %v1427 = vsel %vm573, %v1164, 0.0
        %v1428 = vsel %vm573, %v1165, 0.0
        %v1429 = vadd.f32 %v1427, %v1428
        %1430 = vadd.xlane.f32.xlu0 %v1429
        %v1431 = vpop.xlane.xlu0 %1430
        %v1432 = vsel %vm573, %v1172, 0.0
        %v1433 = vsel %vm573, %v1173, 0.0
        %v1434 = vadd.f32 %v1432, %v1433
        %1435 = vadd.xlane.f32.xlu0 %v1434
        %v1436 = vpop.xlane.xlu0 %1435
        %v1437 = vsel %vm573, %v1180, 0.0
        %v1438 = vsel %vm573, %v1181, 0.0
        %v1439 = vadd.f32 %v1437, %v1438
        %1440 = vadd.xlane.f32.xlu0 %v1439
        %v1441 = vpop.xlane.xlu0 %1440
        %v1442 = vsel %vm573, %v1188, 0.0
        %v1443 = vsel %vm573, %v1189, 0.0
        %v1444 = vadd.f32 %v1442, %v1443
        %1445 = vadd.xlane.f32.xlu0 %v1444
        %v1446 = vpop.xlane.xlu0 %1445
        %v1447 = vsel %vm573, %v1196, 0.0
        %v1448 = vsel %vm573, %v1197, 0.0
        %v1449 = vadd.f32 %v1447, %v1448
        %1450 = vadd.xlane.f32.xlu0 %v1449
        %v1451 = vpop.xlane.xlu0 %1450
        %v1452 = vsel %vm573, %v1204, 0.0
        %v1453 = vsel %vm573, %v1205, 0.0
        %v1454 = vadd.f32 %v1452, %v1453
        %1455 = vadd.xlane.f32.xlu0 %v1454
        %v1456 = vpop.xlane.xlu0 %1455
        %v1457 = vsel %vm573, %v1212, 0.0
        %v1458 = vsel %vm573, %v1213, 0.0
        %v1459 = vadd.f32 %v1457, %v1458
        %1460 = vadd.xlane.f32.xlu0 %v1459
        %v1461 = vpop.xlane.xlu0 %1460
        %v1462 = vsel %vm573, %v1220, 0.0
        %v1463 = vsel %vm573, %v1221, 0.0
        %v1464 = vadd.f32 %v1462, %v1463
        %1465 = vadd.xlane.f32.xlu0 %v1464
        %v1466 = vpop.xlane.xlu0 %1465
        %v1467 = vsel %vm573, %v1228, 0.0
        %v1468 = vsel %vm573, %v1229, 0.0
        %v1469 = vadd.f32 %v1467, %v1468
        %1470 = vadd.xlane.f32.xlu0 %v1469
        %v1471 = vpop.xlane.xlu0 %1470
        %v1472 = vsel %vm573, %v1236, 0.0
        %v1473 = vsel %vm573, %v1237, 0.0
        %v1474 = vadd.f32 %v1472, %v1473
        %1475 = vadd.xlane.f32.xlu0 %v1474
        %v1476 = vpop.xlane.xlu0 %1475
        %v1477 = vsel %vm573, %v1244, 0.0
        %v1478 = vsel %vm573, %v1245, 0.0
        %v1479 = vadd.f32 %v1477, %v1478
        %1480 = vadd.xlane.f32.xlu0 %v1479
        %v1481 = vpop.xlane.xlu0 %1480
        %v1482 = vsel %vm573, %v1252, 0.0
        %v1483 = vsel %vm573, %v1253, 0.0
        %v1484 = vadd.f32 %v1482, %v1483
        %1485 = vadd.xlane.f32.xlu0 %v1484
        %v1486 = vpop.xlane.xlu0 %1485
        %v1487 = vsel %vm573, %v1260, 0.0
        %v1488 = vsel %vm573, %v1261, 0.0
        %v1489 = vadd.f32 %v1487, %v1488
        %1490 = vadd.xlane.f32.xlu0 %v1489
        %v1491 = vpop.xlane.xlu0 %1490
        %v1492 = vsel %vm573, %v1268, 0.0
        %v1493 = vsel %vm573, %v1269, 0.0
        %v1494 = vadd.f32 %v1492, %v1493
        %1495 = vadd.xlane.f32.xlu0 %v1494
        %v1496 = vpop.xlane.xlu0 %1495
        %v1497 = vsel %vm573, %v1276, 0.0
        %v1498 = vsel %vm573, %v1277, 0.0
        %v1499 = vadd.f32 %v1497, %v1498
        %1500 = vadd.xlane.f32.xlu0 %v1499
        %v1501 = vpop.xlane.xlu0 %1500
        %v1502 = vsel %vm573, %v1346, 0.0
        %v1503 = vrot.slane %v1502, 4
        %v1504 = vadd.f32 %v1502, %v1503
        %v1505 = vrot.slane %v1504, 2
        %v1506 = vadd.f32 %v1504, %v1505
        %v1507 = vrot.slane %v1506, 1
        %v1508 = vadd.f32 %v1506, %v1507
        %v1509 = vsel %vm573, %v1351, 0.0
        %v1510 = vrot.slane %v1509, 4
        %v1511 = vadd.f32 %v1509, %v1510
        %v1512 = vrot.slane %v1511, 2
        %v1513 = vadd.f32 %v1511, %v1512
        %v1514 = vrot.slane %v1513, 1
        %v1515 = vadd.f32 %v1513, %v1514
        %v1516 = vsel %vm573, %v1356, 0.0
        %v1517 = vrot.slane %v1516, 4
        %v1518 = vadd.f32 %v1516, %v1517
        %v1519 = vrot.slane %v1518, 2
        %v1520 = vadd.f32 %v1518, %v1519
        %v1521 = vrot.slane %v1520, 1
        %v1522 = vadd.f32 %v1520, %v1521
        %v1523 = vsel %vm573, %v1361, 0.0
        %v1524 = vrot.slane %v1523, 4
        %v1525 = vadd.f32 %v1523, %v1524
        %v1526 = vrot.slane %v1525, 2
        %v1527 = vadd.f32 %v1525, %v1526
        %v1528 = vrot.slane %v1527, 1
        %v1529 = vadd.f32 %v1527, %v1528
        %v1530 = vsel %vm573, %v1366, 0.0
        %v1531 = vrot.slane %v1530, 4
        %v1532 = vadd.f32 %v1530, %v1531
        %v1533 = vrot.slane %v1532, 2
        %v1534 = vadd.f32 %v1532, %v1533
        %v1535 = vrot.slane %v1534, 1
        %v1536 = vadd.f32 %v1534, %v1535
        %v1537 = vsel %vm573, %v1371, 0.0
        %v1538 = vrot.slane %v1537, 4
        %v1539 = vadd.f32 %v1537, %v1538
        %v1540 = vrot.slane %v1539, 2
        %v1541 = vadd.f32 %v1539, %v1540
        %v1542 = vrot.slane %v1541, 1
        %v1543 = vadd.f32 %v1541, %v1542
        %v1544 = vsel %vm573, %v1376, 0.0
        %v1545 = vrot.slane %v1544, 4
        %v1546 = vadd.f32 %v1544, %v1545
        %v1547 = vrot.slane %v1546, 2
        %v1548 = vadd.f32 %v1546, %v1547
        %v1549 = vrot.slane %v1548, 1
        %v1550 = vadd.f32 %v1548, %v1549
        %v1551 = vsel %vm573, %v1381, 0.0
        %v1552 = vrot.slane %v1551, 4
        %v1553 = vadd.f32 %v1551, %v1552
        %v1554 = vrot.slane %v1553, 2
        %v1555 = vadd.f32 %v1553, %v1554
        %v1556 = vrot.slane %v1555, 1
        %v1557 = vadd.f32 %v1555, %v1556
        %v1558 = vsel %vm573, %v1386, 0.0
        %v1559 = vrot.slane %v1558, 4
        %v1560 = vadd.f32 %v1558, %v1559
        %v1561 = vrot.slane %v1560, 2
        %v1562 = vadd.f32 %v1560, %v1561
        %v1563 = vrot.slane %v1562, 1
        %v1564 = vadd.f32 %v1562, %v1563
        %v1565 = vsel %vm573, %v1391, 0.0
        %v1566 = vrot.slane %v1565, 4
        %v1567 = vadd.f32 %v1565, %v1566
        %v1568 = vrot.slane %v1567, 2
        %v1569 = vadd.f32 %v1567, %v1568
        %v1570 = vrot.slane %v1569, 1
        %v1571 = vadd.f32 %v1569, %v1570
        %v1572 = vsel %vm573, %v1396, 0.0
        %v1573 = vrot.slane %v1572, 4
        %v1574 = vadd.f32 %v1572, %v1573
        %v1575 = vrot.slane %v1574, 2
        %v1576 = vadd.f32 %v1574, %v1575
        %v1577 = vrot.slane %v1576, 1
        %v1578 = vadd.f32 %v1576, %v1577
        %v1579 = vsel %vm573, %v1401, 0.0
        %v1580 = vrot.slane %v1579, 4
        %v1581 = vadd.f32 %v1579, %v1580
        %v1582 = vrot.slane %v1581, 2
        %v1583 = vadd.f32 %v1581, %v1582
        %v1584 = vrot.slane %v1583, 1
        %v1585 = vadd.f32 %v1583, %v1584
        %v1586 = vsel %vm573, %v1406, 0.0
        %v1587 = vrot.slane %v1586, 4
        %v1588 = vadd.f32 %v1586, %v1587
        %v1589 = vrot.slane %v1588, 2
        %v1590 = vadd.f32 %v1588, %v1589
        %v1591 = vrot.slane %v1590, 1
        %v1592 = vadd.f32 %v1590, %v1591
        %v1593 = vsel %vm573, %v1411, 0.0
        %v1594 = vrot.slane %v1593, 4
        %v1595 = vadd.f32 %v1593, %v1594
        %v1596 = vrot.slane %v1595, 2
        %v1597 = vadd.f32 %v1595, %v1596
        %v1598 = vrot.slane %v1597, 1
        %v1599 = vadd.f32 %v1597, %v1598
        %v1600 = vsel %vm573, %v1416, 0.0
        %v1601 = vrot.slane %v1600, 4
        %v1602 = vadd.f32 %v1600, %v1601
        %v1603 = vrot.slane %v1602, 2
        %v1604 = vadd.f32 %v1602, %v1603
        %v1605 = vrot.slane %v1604, 1
        %v1606 = vadd.f32 %v1604, %v1605
        %v1607 = vsel %vm573, %v1421, 0.0
        %v1608 = vrot.slane %v1607, 4
        %v1609 = vadd.f32 %v1607, %v1608
        %v1610 = vrot.slane %v1609, 2
        %v1611 = vadd.f32 %v1609, %v1610
        %v1612 = vrot.slane %v1611, 1
        %v1613 = vadd.f32 %v1611, %v1612
        %v1614 = vsel %vm573, %v1426, 0.0
        %v1615 = vrot.slane %v1614, 4
        %v1616 = vadd.f32 %v1614, %v1615
        %v1617 = vrot.slane %v1616, 2
        %v1618 = vadd.f32 %v1616, %v1617
        %v1619 = vrot.slane %v1618, 1
        %v1620 = vadd.f32 %v1618, %v1619
        %v1621 = vsel %vm573, %v1431, 0.0
        %v1622 = vrot.slane %v1621, 4
        %v1623 = vadd.f32 %v1621, %v1622
        %v1624 = vrot.slane %v1623, 2
        %v1625 = vadd.f32 %v1623, %v1624
        %v1626 = vrot.slane %v1625, 1
        %v1627 = vadd.f32 %v1625, %v1626
        %v1628 = vsel %vm573, %v1436, 0.0
        %v1629 = vrot.slane %v1628, 4
        %v1630 = vadd.f32 %v1628, %v1629
        %v1631 = vrot.slane %v1630, 2
        %v1632 = vadd.f32 %v1630, %v1631
        %v1633 = vrot.slane %v1632, 1
        %v1634 = vadd.f32 %v1632, %v1633
        %v1635 = vsel %vm573, %v1441, 0.0
        %v1636 = vrot.slane %v1635, 4
        %v1637 = vadd.f32 %v1635, %v1636
        %v1638 = vrot.slane %v1637, 2
        %v1639 = vadd.f32 %v1637, %v1638
        %v1640 = vrot.slane %v1639, 1
        %v1641 = vadd.f32 %v1639, %v1640
        %v1642 = vsel %vm573, %v1446, 0.0
        %v1643 = vrot.slane %v1642, 4
        %v1644 = vadd.f32 %v1642, %v1643
        %v1645 = vrot.slane %v1644, 2
        %v1646 = vadd.f32 %v1644, %v1645
        %v1647 = vrot.slane %v1646, 1
        %v1648 = vadd.f32 %v1646, %v1647
        %v1649 = vsel %vm573, %v1451, 0.0
        %v1650 = vrot.slane %v1649, 4
        %v1651 = vadd.f32 %v1649, %v1650
        %v1652 = vrot.slane %v1651, 2
        %v1653 = vadd.f32 %v1651, %v1652
        %v1654 = vrot.slane %v1653, 1
        %v1655 = vadd.f32 %v1653, %v1654
        %v1656 = vsel %vm573, %v1456, 0.0
        %v1657 = vrot.slane %v1656, 4
        %v1658 = vadd.f32 %v1656, %v1657
        %v1659 = vrot.slane %v1658, 2
        %v1660 = vadd.f32 %v1658, %v1659
        %v1661 = vrot.slane %v1660, 1
        %v1662 = vadd.f32 %v1660, %v1661
        %v1663 = vsel %vm573, %v1461, 0.0
        %v1664 = vrot.slane %v1663, 4
        %v1665 = vadd.f32 %v1663, %v1664
        %v1666 = vrot.slane %v1665, 2
        %v1667 = vadd.f32 %v1665, %v1666
        %v1668 = vrot.slane %v1667, 1
        %v1669 = vadd.f32 %v1667, %v1668
        %v1670 = vsel %vm573, %v1466, 0.0
        %v1671 = vrot.slane %v1670, 4
        %v1672 = vadd.f32 %v1670, %v1671
        %v1673 = vrot.slane %v1672, 2
        %v1674 = vadd.f32 %v1672, %v1673
        %v1675 = vrot.slane %v1674, 1
        %v1676 = vadd.f32 %v1674, %v1675
        %v1677 = vsel %vm573, %v1471, 0.0
        %v1678 = vrot.slane %v1677, 4
        %v1679 = vadd.f32 %v1677, %v1678
        %v1680 = vrot.slane %v1679, 2
        %v1681 = vadd.f32 %v1679, %v1680
        %v1682 = vrot.slane %v1681, 1
        %v1683 = vadd.f32 %v1681, %v1682
        %v1684 = vsel %vm573, %v1476, 0.0
        %v1685 = vrot.slane %v1684, 4
        %v1686 = vadd.f32 %v1684, %v1685
        %v1687 = vrot.slane %v1686, 2
        %v1688 = vadd.f32 %v1686, %v1687
        %v1689 = vrot.slane %v1688, 1
        %v1690 = vadd.f32 %v1688, %v1689
        %v1691 = vsel %vm573, %v1481, 0.0
        %v1692 = vrot.slane %v1691, 4
        %v1693 = vadd.f32 %v1691, %v1692
        %v1694 = vrot.slane %v1693, 2
        %v1695 = vadd.f32 %v1693, %v1694
        %v1696 = vrot.slane %v1695, 1
        %v1697 = vadd.f32 %v1695, %v1696
        %v1698 = vsel %vm573, %v1486, 0.0
        %v1699 = vrot.slane %v1698, 4
        %v1700 = vadd.f32 %v1698, %v1699
        %v1701 = vrot.slane %v1700, 2
        %v1702 = vadd.f32 %v1700, %v1701
        %v1703 = vrot.slane %v1702, 1
        %v1704 = vadd.f32 %v1702, %v1703
        %v1705 = vsel %vm573, %v1491, 0.0
        %v1706 = vrot.slane %v1705, 4
        %v1707 = vadd.f32 %v1705, %v1706
        %v1708 = vrot.slane %v1707, 2
        %v1709 = vadd.f32 %v1707, %v1708
        %v1710 = vrot.slane %v1709, 1
        %v1711 = vadd.f32 %v1709, %v1710
        %v1712 = vsel %vm573, %v1496, 0.0
        %v1713 = vrot.slane %v1712, 4
        %v1714 = vadd.f32 %v1712, %v1713
        %v1715 = vrot.slane %v1714, 2
        %v1716 = vadd.f32 %v1714, %v1715
        %v1717 = vrot.slane %v1716, 1
        %v1718 = vadd.f32 %v1716, %v1717
        %v1719 = vsel %vm573, %v1501, 0.0
        %v1720 = vrot.slane %v1719, 4
        %v1721 = vadd.f32 %v1719, %v1720
        %v1722 = vrot.slane %v1721, 2
        %v1723 = vadd.f32 %v1721, %v1722
        %v1724 = vrot.slane %v1723, 1
        %v1725 = vadd.f32 %v1723, %v1724
        %v1726 = vmul.f32 %v740, 0.001953125
        %v1727 = vmul.f32 %v747, 0.001953125
        %v1728 = vmul.f32 %v754, 0.001953125
        %v1729 = vmul.f32 %v761, 0.001953125
        %v1730 = vmul.f32 %v768, 0.001953125
        %v1731 = vmul.f32 %v775, 0.001953125
        %v1732 = vmul.f32 %v782, 0.001953125
        %v1733 = vmul.f32 %v789, 0.001953125
        %v1734 = vmul.f32 %v796, 0.001953125
        %v1735 = vmul.f32 %v803, 0.001953125
        %v1736 = vmul.f32 %v810, 0.001953125
        %v1737 = vmul.f32 %v817, 0.001953125
        %v1738 = vmul.f32 %v824, 0.001953125
        %v1739 = vmul.f32 %v831, 0.001953125
        %v1740 = vmul.f32 %v838, 0.001953125
        %v1741 = vmul.f32 %v845, 0.001953125
        %v1742 = vmul.f32 %v852, 0.001953125
        %v1743 = vmul.f32 %v859, 0.001953125
        %v1744 = vmul.f32 %v866, 0.001953125
        %v1745 = vmul.f32 %v873, 0.001953125
        %v1746 = vmul.f32 %v880, 0.001953125
        %v1747 = vmul.f32 %v887, 0.001953125
        %v1748 = vmul.f32 %v894, 0.001953125
        %v1749 = vmul.f32 %v901, 0.001953125
        %v1750 = vmul.f32 %v908, 0.001953125
        %v1751 = vmul.f32 %v915, 0.001953125
        %v1752 = vmul.f32 %v922, 0.001953125
        %v1753 = vmul.f32 %v929, 0.001953125
        %v1754 = vmul.f32 %v936, 0.001953125
        %v1755 = vmul.f32 %v943, 0.001953125
        %v1756 = vmul.f32 %v950, 0.001953125
        %v1757 = vmul.f32 %v957, 0.001953125
        %v1758 = vmul.f32 %v1508, 0.001953125
        %v1759 = vmul.f32 %v1515, 0.001953125
        %v1760 = vmul.f32 %v1522, 0.001953125
        %v1761 = vmul.f32 %v1529, 0.001953125
        %v1762 = vmul.f32 %v1536, 0.001953125
        %v1763 = vmul.f32 %v1543, 0.001953125
        %v1764 = vmul.f32 %v1550, 0.001953125
        %v1765 = vmul.f32 %v1557, 0.001953125
        %v1766 = vmul.f32 %v1564, 0.001953125
        %v1767 = vmul.f32 %v1571, 0.001953125
        %v1768 = vmul.f32 %v1578, 0.001953125
        %v1769 = vmul.f32 %v1585, 0.001953125
        %v1770 = vmul.f32 %v1592, 0.001953125
        %v1771 = vmul.f32 %v1599, 0.001953125
        %v1772 = vmul.f32 %v1606, 0.001953125
        %v1773 = vmul.f32 %v1613, 0.001953125
        %v1774 = vmul.f32 %v1620, 0.001953125
        %v1775 = vmul.f32 %v1627, 0.001953125
        %v1776 = vmul.f32 %v1634, 0.001953125
        %v1777 = vmul.f32 %v1641, 0.001953125
        %v1778 = vmul.f32 %v1648, 0.001953125
        %v1779 = vmul.f32 %v1655, 0.001953125
        %v1780 = vmul.f32 %v1662, 0.001953125
        %v1781 = vmul.f32 %v1669, 0.001953125
        %v1782 = vmul.f32 %v1676, 0.001953125
        %v1783 = vmul.f32 %v1683, 0.001953125
        %v1784 = vmul.f32 %v1690, 0.001953125
        %v1785 = vmul.f32 %v1697, 0.001953125
        %v1786 = vmul.f32 %v1704, 0.001953125
        %v1787 = vmul.f32 %v1711, 0.001953125
        %v1788 = vmul.f32 %v1718, 0.001953125
        %v1789 = vmul.f32 %v1725, 0.001953125
        %v1790 = vmul.f32 %v1726, %v1726
        %v1791 = vmul.f32 %v1727, %v1727
        %v1792 = vmul.f32 %v1728, %v1728
        %v1793 = vmul.f32 %v1729, %v1729
        %v1794 = vmul.f32 %v1730, %v1730
        %v1795 = vmul.f32 %v1731, %v1731
        %v1796 = vmul.f32 %v1732, %v1732
        %v1797 = vmul.f32 %v1733, %v1733
        %v1798 = vmul.f32 %v1734, %v1734
        %v1799 = vmul.f32 %v1735, %v1735
        %v1800 = vmul.f32 %v1736, %v1736
        %v1801 = vmul.f32 %v1737, %v1737
        %v1802 = vmul.f32 %v1738, %v1738
        %v1803 = vmul.f32 %v1739, %v1739
        %v1804 = vmul.f32 %v1740, %v1740
        %v1805 = vmul.f32 %v1741, %v1741
        %v1806 = vmul.f32 %v1742, %v1742
        %v1807 = vmul.f32 %v1743, %v1743
        %v1808 = vmul.f32 %v1744, %v1744
        %v1809 = vmul.f32 %v1745, %v1745
        %v1810 = vmul.f32 %v1746, %v1746
        %v1811 = vmul.f32 %v1747, %v1747
        %v1812 = vmul.f32 %v1748, %v1748
        %v1813 = vmul.f32 %v1749, %v1749
        %v1814 = vmul.f32 %v1750, %v1750
        %v1815 = vmul.f32 %v1751, %v1751
        %v1816 = vmul.f32 %v1752, %v1752
        %v1817 = vmul.f32 %v1753, %v1753
        %v1818 = vmul.f32 %v1754, %v1754
        %v1819 = vmul.f32 %v1755, %v1755
        %v1820 = vmul.f32 %v1756, %v1756
        %v1821 = vmul.f32 %v1757, %v1757
        %v1822 = vsub.f32 %v1758, %v1790
        %v1823 = vsub.f32 %v1759, %v1791
        %v1824 = vsub.f32 %v1760, %v1792
        %v1825 = vsub.f32 %v1761, %v1793
        %v1826 = vsub.f32 %v1762, %v1794
        %v1827 = vsub.f32 %v1763, %v1795
        %v1828 = vsub.f32 %v1764, %v1796
        %v1829 = vsub.f32 %v1765, %v1797
        %v1830 = vsub.f32 %v1766, %v1798
        %v1831 = vsub.f32 %v1767, %v1799
        %v1832 = vsub.f32 %v1768, %v1800
        %v1833 = vsub.f32 %v1769, %v1801
        %v1834 = vsub.f32 %v1770, %v1802
        %v1835 = vsub.f32 %v1771, %v1803
        %v1836 = vsub.f32 %v1772, %v1804
        %v1837 = vsub.f32 %v1773, %v1805
        %v1838 = vsub.f32 %v1774, %v1806
        %v1839 = vsub.f32 %v1775, %v1807
        %v1840 = vsub.f32 %v1776, %v1808
        %v1841 = vsub.f32 %v1777, %v1809
        %v1842 = vsub.f32 %v1778, %v1810
        %v1843 = vsub.f32 %v1779, %v1811
        %v1844 = vsub.f32 %v1780, %v1812
        %v1845 = vsub.f32 %v1781, %v1813
        %v1846 = vsub.f32 %v1782, %v1814
        %v1847 = vsub.f32 %v1783, %v1815
        %v1848 = vsub.f32 %v1784, %v1816
        %v1849 = vsub.f32 %v1785, %v1817
        %v1850 = vsub.f32 %v1786, %v1818
        %v1851 = vsub.f32 %v1787, %v1819
        %v1852 = vsub.f32 %v1788, %v1820
        %v1853 = vsub.f32 %v1789, %v1821
        %v1854 = vmax.f32 %v1822, 0.0
        %v1855 = vmax.f32 %v1823, 0.0
        %v1856 = vmax.f32 %v1824, 0.0
        %v1857 = vmax.f32 %v1825, 0.0
        %v1858 = vmax.f32 %v1826, 0.0
        %v1859 = vmax.f32 %v1827, 0.0
        %v1860 = vmax.f32 %v1828, 0.0
        %v1861 = vmax.f32 %v1829, 0.0
        %v1862 = vmax.f32 %v1830, 0.0
        %v1863 = vmax.f32 %v1831, 0.0
        %v1864 = vmax.f32 %v1832, 0.0
        %v1865 = vmax.f32 %v1833, 0.0
        %v1866 = vmax.f32 %v1834, 0.0
        %v1867 = vmax.f32 %v1835, 0.0
        %v1868 = vmax.f32 %v1836, 0.0
        %v1869 = vmax.f32 %v1837, 0.0
        %v1870 = vmax.f32 %v1838, 0.0
        %v1871 = vmax.f32 %v1839, 0.0
        %v1872 = vmax.f32 %v1840, 0.0
        %v1873 = vmax.f32 %v1841, 0.0
        %v1874 = vmax.f32 %v1842, 0.0
        %v1875 = vmax.f32 %v1843, 0.0
        %v1876 = vmax.f32 %v1844, 0.0
        %v1877 = vmax.f32 %v1845, 0.0
        %v1878 = vmax.f32 %v1846, 0.0
        %v1879 = vmax.f32 %v1847, 0.0
        %v1880 = vmax.f32 %v1848, 0.0
        %v1881 = vmax.f32 %v1849, 0.0
        %v1882 = vmax.f32 %v1850, 0.0
        %v1883 = vmax.f32 %v1851, 0.0
        %v1884 = vmax.f32 %v1852, 0.0
        %v1885 = vmax.f32 %v1853, 0.0
        %v1886 = vadd.f32 %v1854, 1e-06
        %v1887 = vadd.f32 %v1855, 1e-06
        %v1888 = vadd.f32 %v1856, 1e-06
        %v1889 = vadd.f32 %v1857, 1e-06
        %v1890 = vadd.f32 %v1858, 1e-06
        %v1891 = vadd.f32 %v1859, 1e-06
        %v1892 = vadd.f32 %v1860, 1e-06
        %v1893 = vadd.f32 %v1861, 1e-06
        %v1894 = vadd.f32 %v1862, 1e-06
        %v1895 = vadd.f32 %v1863, 1e-06
        %v1896 = vadd.f32 %v1864, 1e-06
        %v1897 = vadd.f32 %v1865, 1e-06
        %v1898 = vadd.f32 %v1866, 1e-06
        %v1899 = vadd.f32 %v1867, 1e-06
        %v1900 = vadd.f32 %v1868, 1e-06
        %v1901 = vadd.f32 %v1869, 1e-06
        %v1902 = vadd.f32 %v1870, 1e-06
        %v1903 = vadd.f32 %v1871, 1e-06
        %v1904 = vadd.f32 %v1872, 1e-06
        %v1905 = vadd.f32 %v1873, 1e-06
        %v1906 = vadd.f32 %v1874, 1e-06
        %v1907 = vadd.f32 %v1875, 1e-06
        %v1908 = vadd.f32 %v1876, 1e-06
        %v1909 = vadd.f32 %v1877, 1e-06
        %v1910 = vadd.f32 %v1878, 1e-06
        %v1911 = vadd.f32 %v1879, 1e-06
        %v1912 = vadd.f32 %v1880, 1e-06
        %v1913 = vadd.f32 %v1881, 1e-06
        %v1914 = vadd.f32 %v1882, 1e-06
        %v1915 = vadd.f32 %v1883, 1e-06
        %v1916 = vadd.f32 %v1884, 1e-06
        %v1917 = vadd.f32 %v1885, 1e-06
        %v1918 = vrsqrt.pop %v1886
        %v1919 = vrsqrt.pop %v1887
        %v1920 = vrsqrt.pop %v1888
        %v1921 = vrsqrt.pop %v1889
        %v1922 = vrsqrt.pop %v1890
        %v1923 = vrsqrt.pop %v1891
        %v1924 = vrsqrt.pop %v1892
        %v1925 = vrsqrt.pop %v1893
        %v1926 = vrsqrt.pop %v1894
        %v1927 = vrsqrt.pop %v1895
        %v1928 = vrsqrt.pop %v1896
        %v1929 = vrsqrt.pop %v1897
        %v1930 = vrsqrt.pop %v1898
        %v1931 = vrsqrt.pop %v1899
        %v1932 = vrsqrt.pop %v1900
        %v1933 = vrsqrt.pop %v1901
        %v1934 = vrsqrt.pop %v1902
        %v1935 = vrsqrt.pop %v1903
        %v1936 = vrsqrt.pop %v1904
        %v1937 = vrsqrt.pop %v1905
        %v1938 = vrsqrt.pop %v1906
        %v1939 = vrsqrt.pop %v1907
        %v1940 = vrsqrt.pop %v1908
        %v1941 = vrsqrt.pop %v1909
        %v1942 = vrsqrt.pop %v1910
        %v1943 = vrsqrt.pop %v1911
        %v1944 = vrsqrt.pop %v1912
        %v1945 = vrsqrt.pop %v1913
        %v1946 = vrsqrt.pop %v1914
        %v1947 = vrsqrt.pop %v1915
        %v1948 = vrsqrt.pop %v1916
        %v1949 = vrsqrt.pop %v1917
        %v1950 = vld [vmem:[%s1] sm:$0x3]
        %v1951 = vld [vmem:[%s1 + $0x2] sm:$0x3]
        %v1952 = vld [vmem:[%s1 + $0x4] sm:$0x3]
        %v1953 = vld [vmem:[%s1 + $0x6] sm:$0x3]
        %v1954 = vld [vmem:[%s1 + $0x8] sm:$0x3]
        %v1955 = vld [vmem:[%s1 + $0xa] sm:$0x3]
        %v1956 = vld [vmem:[%s1 + $0xc] sm:$0x3]
        %v1957 = vld [vmem:[%s1 + $0xe] sm:$0x3]
        %v1958 = vld [vmem:[%s1 + $0x10] sm:$0x3]
        %v1959 = vld [vmem:[%s1 + $0x12] sm:$0x3]
        %v1960 = vld [vmem:[%s1 + $0x14] sm:$0x3]
        %v1961 = vld [vmem:[%s1 + $0x16] sm:$0x3]
        %v1962 = vld [vmem:[%s1 + $0x18] sm:$0x3]
        %v1963 = vld [vmem:[%s1 + $0x1a] sm:$0x3]
        %v1964 = vld [vmem:[%s1 + $0x1c] sm:$0x3]
        %v1965 = vld [vmem:[%s1 + $0x1e] sm:$0x3]
        %v1966 = vld [vmem:[%s1 + $0x20] sm:$0x3]
        %v1967 = vld [vmem:[%s1 + $0x22] sm:$0x3]
        %v1968 = vld [vmem:[%s1 + $0x24] sm:$0x3]
        %v1969 = vld [vmem:[%s1 + $0x26] sm:$0x3]
        %v1970 = vld [vmem:[%s1 + $0x28] sm:$0x3]
        %v1971 = vld [vmem:[%s1 + $0x2a] sm:$0x3]
        %v1972 = vld [vmem:[%s1 + $0x2c] sm:$0x3]
        %v1973 = vld [vmem:[%s1 + $0x2e] sm:$0x3]
        %v1974 = vld [vmem:[%s1 + $0x30] sm:$0x3]
        %v1975 = vld [vmem:[%s1 + $0x32] sm:$0x3]
        %v1976 = vld [vmem:[%s1 + $0x34] sm:$0x3]
        %v1977 = vld [vmem:[%s1 + $0x36] sm:$0x3]
        %v1978 = vld [vmem:[%s1 + $0x38] sm:$0x3]
        %v1979 = vld [vmem:[%s1 + $0x3a] sm:$0x3]
        %v1980 = vld [vmem:[%s1 + $0x3c] sm:$0x3]
        %v1981 = vld [vmem:[%s1 + $0x3e] sm:$0x3]
        %v1982 = vld [vmem:[%s2] sm:$0x3]
        %v1983 = vld [vmem:[%s2 + $0x2] sm:$0x3]
        %v1984 = vld [vmem:[%s2 + $0x4] sm:$0x3]
        %v1985 = vld [vmem:[%s2 + $0x6] sm:$0x3]
        %v1986 = vld [vmem:[%s2 + $0x8] sm:$0x3]
        %v1987 = vld [vmem:[%s2 + $0xa] sm:$0x3]
        %v1988 = vld [vmem:[%s2 + $0xc] sm:$0x3]
        %v1989 = vld [vmem:[%s2 + $0xe] sm:$0x3]
        %v1990 = vld [vmem:[%s2 + $0x10] sm:$0x3]
        %v1991 = vld [vmem:[%s2 + $0x12] sm:$0x3]
        %v1992 = vld [vmem:[%s2 + $0x14] sm:$0x3]
        %v1993 = vld [vmem:[%s2 + $0x16] sm:$0x3]
        %v1994 = vld [vmem:[%s2 + $0x18] sm:$0x3]
        %v1995 = vld [vmem:[%s2 + $0x1a] sm:$0x3]
        %v1996 = vld [vmem:[%s2 + $0x1c] sm:$0x3]
        %v1997 = vld [vmem:[%s2 + $0x1e] sm:$0x3]
        %v1998 = vld [vmem:[%s2 + $0x20] sm:$0x3]
        %v1999 = vld [vmem:[%s2 + $0x22] sm:$0x3]
        %v2000 = vld [vmem:[%s2 + $0x24] sm:$0x3]
        %v2001 = vld [vmem:[%s2 + $0x26] sm:$0x3]
        %v2002 = vld [vmem:[%s2 + $0x28] sm:$0x3]
        %v2003 = vld [vmem:[%s2 + $0x2a] sm:$0x3]
        %v2004 = vld [vmem:[%s2 + $0x2c] sm:$0x3]
        %v2005 = vld [vmem:[%s2 + $0x2e] sm:$0x3]
        %v2006 = vld [vmem:[%s2 + $0x30] sm:$0x3]
        %v2007 = vld [vmem:[%s2 + $0x32] sm:$0x3]
        %v2008 = vld [vmem:[%s2 + $0x34] sm:$0x3]
        %v2009 = vld [vmem:[%s2 + $0x36] sm:$0x3]
        %v2010 = vld [vmem:[%s2 + $0x38] sm:$0x3]
        %v2011 = vld [vmem:[%s2 + $0x3a] sm:$0x3]
        %v2012 = vld [vmem:[%s2 + $0x3c] sm:$0x3]
        %v2013 = vld [vmem:[%s2 + $0x3e] sm:$0x3]
        %v2014 = vmul.f32 %v1918, %v1950
        %v2015 = vmul.f32 %v1919, %v1951
        %v2016 = vmul.f32 %v1920, %v1952
        %v2017 = vmul.f32 %v1921, %v1953
        %v2018 = vmul.f32 %v1922, %v1954
        %v2019 = vmul.f32 %v1923, %v1955
        %v2020 = vmul.f32 %v1924, %v1956
        %v2021 = vmul.f32 %v1925, %v1957
        %v2022 = vmul.f32 %v1926, %v1958
        %v2023 = vmul.f32 %v1927, %v1959
        %v2024 = vmul.f32 %v1928, %v1960
        %v2025 = vmul.f32 %v1929, %v1961
        %v2026 = vmul.f32 %v1930, %v1962
        %v2027 = vmul.f32 %v1931, %v1963
        %v2028 = vmul.f32 %v1932, %v1964
        %v2029 = vmul.f32 %v1933, %v1965
        %v2030 = vmul.f32 %v1934, %v1966
        %v2031 = vmul.f32 %v1935, %v1967
        %v2032 = vmul.f32 %v1936, %v1968
        %v2033 = vmul.f32 %v1937, %v1969
        %v2034 = vmul.f32 %v1938, %v1970
        %v2035 = vmul.f32 %v1939, %v1971
        %v2036 = vmul.f32 %v1940, %v1972
        %v2037 = vmul.f32 %v1941, %v1973
        %v2038 = vmul.f32 %v1942, %v1974
        %v2039 = vmul.f32 %v1943, %v1975
        %v2040 = vmul.f32 %v1944, %v1976
        %v2041 = vmul.f32 %v1945, %v1977
        %v2042 = vmul.f32 %v1946, %v1978
        %v2043 = vmul.f32 %v1947, %v1979
        %v2044 = vmul.f32 %v1948, %v1980
        %v2045 = vmul.f32 %v1949, %v1981
        %v2046 = vmul.f32 %v1726, %v2014
        %v2047 = vmul.f32 %v1727, %v2015
        %v2048 = vmul.f32 %v1728, %v2016
        %v2049 = vmul.f32 %v1729, %v2017
        %v2050 = vmul.f32 %v1730, %v2018
        %v2051 = vmul.f32 %v1731, %v2019
        %v2052 = vmul.f32 %v1732, %v2020
        %v2053 = vmul.f32 %v1733, %v2021
        %v2054 = vmul.f32 %v1734, %v2022
        %v2055 = vmul.f32 %v1735, %v2023
        %v2056 = vmul.f32 %v1736, %v2024
        %v2057 = vmul.f32 %v1737, %v2025
        %v2058 = vmul.f32 %v1738, %v2026
        %v2059 = vmul.f32 %v1739, %v2027
        %v2060 = vmul.f32 %v1740, %v2028
        %v2061 = vmul.f32 %v1741, %v2029
        %v2062 = vmul.f32 %v1742, %v2030
        %v2063 = vmul.f32 %v1743, %v2031
        %v2064 = vmul.f32 %v1744, %v2032
        %v2065 = vmul.f32 %v1745, %v2033
        %v2066 = vmul.f32 %v1746, %v2034
        %v2067 = vmul.f32 %v1747, %v2035
        %v2068 = vmul.f32 %v1748, %v2036
        %v2069 = vmul.f32 %v1749, %v2037
        %v2070 = vmul.f32 %v1750, %v2038
        %v2071 = vmul.f32 %v1751, %v2039
        %v2072 = vmul.f32 %v1752, %v2040
        %v2073 = vmul.f32 %v1753, %v2041
        %v2074 = vmul.f32 %v1754, %v2042
        %v2075 = vmul.f32 %v1755, %v2043
        %v2076 = vmul.f32 %v1756, %v2044
        %v2077 = vmul.f32 %v1757, %v2045
        %v2078 = vsub.f32 %v1982, %v2046
        %v2079 = vsub.f32 %v1983, %v2047
        %v2080 = vsub.f32 %v1984, %v2048
        %v2081 = vsub.f32 %v1985, %v2049
        %v2082 = vsub.f32 %v1986, %v2050
        %v2083 = vsub.f32 %v1987, %v2051
        %v2084 = vsub.f32 %v1988, %v2052
        %v2085 = vsub.f32 %v1989, %v2053
        %v2086 = vsub.f32 %v1990, %v2054
        %v2087 = vsub.f32 %v1991, %v2055
        %v2088 = vsub.f32 %v1992, %v2056
        %v2089 = vsub.f32 %v1993, %v2057
        %v2090 = vsub.f32 %v1994, %v2058
        %v2091 = vsub.f32 %v1995, %v2059
        %v2092 = vsub.f32 %v1996, %v2060
        %v2093 = vsub.f32 %v1997, %v2061
        %v2094 = vsub.f32 %v1998, %v2062
        %v2095 = vsub.f32 %v1999, %v2063
        %v2096 = vsub.f32 %v2000, %v2064
        %v2097 = vsub.f32 %v2001, %v2065
        %v2098 = vsub.f32 %v2002, %v2066
        %v2099 = vsub.f32 %v2003, %v2067
        %v2100 = vsub.f32 %v2004, %v2068
        %v2101 = vsub.f32 %v2005, %v2069
        %v2102 = vsub.f32 %v2006, %v2070
        %v2103 = vsub.f32 %v2007, %v2071
        %v2104 = vsub.f32 %v2008, %v2072
        %v2105 = vsub.f32 %v2009, %v2073
        %v2106 = vsub.f32 %v2010, %v2074
        %v2107 = vsub.f32 %v2011, %v2075
        %v2108 = vsub.f32 %v2012, %v2076
        %v2109 = vsub.f32 %v2013, %v2077
        %2111 = vset.pattern.permute.xlu0 0
        %2112 = vperm.xlu0 %2111, %v2014
        %v2113 = vpop.permute.xlu0 %2112
        %2115 = vset.pattern.permute.xlu0 0
        %2116 = vperm.xlu0 %2115, %v2015
        %v2117 = vpop.permute.xlu0 %2116
        %2119 = vset.pattern.permute.xlu0 0
        %2120 = vperm.xlu0 %2119, %v2016
        %v2121 = vpop.permute.xlu0 %2120
        %2123 = vset.pattern.permute.xlu0 0
        %2124 = vperm.xlu0 %2123, %v2017
        %v2125 = vpop.permute.xlu0 %2124
        %2127 = vset.pattern.permute.xlu0 0
        %2128 = vperm.xlu0 %2127, %v2018
        %v2129 = vpop.permute.xlu0 %2128
        %2131 = vset.pattern.permute.xlu0 0
        %2132 = vperm.xlu0 %2131, %v2019
        %v2133 = vpop.permute.xlu0 %2132
        %2135 = vset.pattern.permute.xlu0 0
        %2136 = vperm.xlu0 %2135, %v2020
        %v2137 = vpop.permute.xlu0 %2136
        %2139 = vset.pattern.permute.xlu0 0
        %2140 = vperm.xlu0 %2139, %v2021
        %v2141 = vpop.permute.xlu0 %2140
        %2143 = vset.pattern.permute.xlu0 0
        %2144 = vperm.xlu0 %2143, %v2022
        %v2145 = vpop.permute.xlu0 %2144
        %2147 = vset.pattern.permute.xlu0 0
        %2148 = vperm.xlu0 %2147, %v2023
        %v2149 = vpop.permute.xlu0 %2148
        %2151 = vset.pattern.permute.xlu0 0
        %2152 = vperm.xlu0 %2151, %v2024
        %v2153 = vpop.permute.xlu0 %2152
        %2155 = vset.pattern.permute.xlu0 0
        %2156 = vperm.xlu0 %2155, %v2025
        %v2157 = vpop.permute.xlu0 %2156
        %2159 = vset.pattern.permute.xlu0 0
        %2160 = vperm.xlu0 %2159, %v2026
        %v2161 = vpop.permute.xlu0 %2160
        %2163 = vset.pattern.permute.xlu0 0
        %2164 = vperm.xlu0 %2163, %v2027
        %v2165 = vpop.permute.xlu0 %2164
        %2167 = vset.pattern.permute.xlu0 0
        %2168 = vperm.xlu0 %2167, %v2028
        %v2169 = vpop.permute.xlu0 %2168
        %2171 = vset.pattern.permute.xlu0 0
        %2172 = vperm.xlu0 %2171, %v2029
        %v2173 = vpop.permute.xlu0 %2172
        %2175 = vset.pattern.permute.xlu0 0
        %2176 = vperm.xlu0 %2175, %v2030
        %v2177 = vpop.permute.xlu0 %2176
        %2179 = vset.pattern.permute.xlu0 0
        %2180 = vperm.xlu0 %2179, %v2031
        %v2181 = vpop.permute.xlu0 %2180
        %2183 = vset.pattern.permute.xlu0 0
        %2184 = vperm.xlu0 %2183, %v2032
        %v2185 = vpop.permute.xlu0 %2184
        %2187 = vset.pattern.permute.xlu0 0
        %2188 = vperm.xlu0 %2187, %v2033
        %v2189 = vpop.permute.xlu0 %2188
        %2191 = vset.pattern.permute.xlu0 0
        %2192 = vperm.xlu0 %2191, %v2034
        %v2193 = vpop.permute.xlu0 %2192
        %2195 = vset.pattern.permute.xlu0 0
        %2196 = vperm.xlu0 %2195, %v2035
        %v2197 = vpop.permute.xlu0 %2196
        %2199 = vset.pattern.permute.xlu0 0
        %2200 = vperm.xlu0 %2199, %v2036
        %v2201 = vpop.permute.xlu0 %2200
        %2203 = vset.pattern.permute.xlu0 0
        %2204 = vperm.xlu0 %2203, %v2037
        %v2205 = vpop.permute.xlu0 %2204
        %2207 = vset.pattern.permute.xlu0 0
        %2208 = vperm.xlu0 %2207, %v2038
        %v2209 = vpop.permute.xlu0 %2208
        %2211 = vset.pattern.permute.xlu0 0
        %2212 = vperm.xlu0 %2211, %v2039
        %v2213 = vpop.permute.xlu0 %2212
        %2215 = vset.pattern.permute.xlu0 0
        %2216 = vperm.xlu0 %2215, %v2040
        %v2217 = vpop.permute.xlu0 %2216
        %2219 = vset.pattern.permute.xlu0 0
        %2220 = vperm.xlu0 %2219, %v2041
        %v2221 = vpop.permute.xlu0 %2220
        %2223 = vset.pattern.permute.xlu0 0
        %2224 = vperm.xlu0 %2223, %v2042
        %v2225 = vpop.permute.xlu0 %2224
        %2227 = vset.pattern.permute.xlu0 0
        %2228 = vperm.xlu0 %2227, %v2043
        %v2229 = vpop.permute.xlu0 %2228
        %2231 = vset.pattern.permute.xlu0 0
        %2232 = vperm.xlu0 %2231, %v2044
        %v2233 = vpop.permute.xlu0 %2232
        %2235 = vset.pattern.permute.xlu0 0
        %2236 = vperm.xlu0 %2235, %v2045
        %v2237 = vpop.permute.xlu0 %2236
        %v2239 = vunpack.c.l.s4 269488144
        %v2240 = vunpack.c.0.s8 %v2239
        %v2241 = vlaneseq
        %v2242 = vshrl.u32 %v2241, 7
        %v2243 = vsub.s32 %v2240, %v2242
        %v2244 = vrot.slane %v2113, %v2243
        %v2246 = vunpack.c.l.s4 269488144
        %v2247 = vunpack.c.0.s8 %v2246
        %v2248 = vlaneseq
        %v2249 = vshrl.u32 %v2248, 7
        %v2250 = vsub.s32 %v2247, %v2249
        %v2251 = vrot.slane %v2117, %v2250
        %v2253 = vunpack.c.l.s4 269488144
        %v2254 = vunpack.c.0.s8 %v2253
        %v2255 = vlaneseq
        %v2256 = vshrl.u32 %v2255, 7
        %v2257 = vsub.s32 %v2254, %v2256
        %v2258 = vrot.slane %v2121, %v2257
        %v2260 = vunpack.c.l.s4 269488144
        %v2261 = vunpack.c.0.s8 %v2260
        %v2262 = vlaneseq
        %v2263 = vshrl.u32 %v2262, 7
        %v2264 = vsub.s32 %v2261, %v2263
        %v2265 = vrot.slane %v2125, %v2264
        %v2267 = vunpack.c.l.s4 269488144
        %v2268 = vunpack.c.0.s8 %v2267
        %v2269 = vlaneseq
        %v2270 = vshrl.u32 %v2269, 7
        %v2271 = vsub.s32 %v2268, %v2270
        %v2272 = vrot.slane %v2129, %v2271
        %v2274 = vunpack.c.l.s4 269488144
        %v2275 = vunpack.c.0.s8 %v2274
        %v2276 = vlaneseq
        %v2277 = vshrl.u32 %v2276, 7
        %v2278 = vsub.s32 %v2275, %v2277
        %v2279 = vrot.slane %v2133, %v2278
        %v2281 = vunpack.c.l.s4 269488144
        %v2282 = vunpack.c.0.s8 %v2281
        %v2283 = vlaneseq
        %v2284 = vshrl.u32 %v2283, 7
        %v2285 = vsub.s32 %v2282, %v2284
        %v2286 = vrot.slane %v2137, %v2285
        %v2288 = vunpack.c.l.s4 269488144
        %v2289 = vunpack.c.0.s8 %v2288
        %v2290 = vlaneseq
        %v2291 = vshrl.u32 %v2290, 7
        %v2292 = vsub.s32 %v2289, %v2291
        %v2293 = vrot.slane %v2141, %v2292
        %v2295 = vunpack.c.l.s4 269488144
        %v2296 = vunpack.c.0.s8 %v2295
        %v2297 = vlaneseq
        %v2298 = vshrl.u32 %v2297, 7
        %v2299 = vsub.s32 %v2296, %v2298
        %v2300 = vrot.slane %v2145, %v2299
        %v2302 = vunpack.c.l.s4 269488144
        %v2303 = vunpack.c.0.s8 %v2302
        %v2304 = vlaneseq
        %v2305 = vshrl.u32 %v2304, 7
        %v2306 = vsub.s32 %v2303, %v2305
        %v2307 = vrot.slane %v2149, %v2306
        %v2309 = vunpack.c.l.s4 269488144
        %v2310 = vunpack.c.0.s8 %v2309
        %v2311 = vlaneseq
        %v2312 = vshrl.u32 %v2311, 7
        %v2313 = vsub.s32 %v2310, %v2312
        %v2314 = vrot.slane %v2153, %v2313
        %v2316 = vunpack.c.l.s4 269488144
        %v2317 = vunpack.c.0.s8 %v2316
        %v2318 = vlaneseq
        %v2319 = vshrl.u32 %v2318, 7
        %v2320 = vsub.s32 %v2317, %v2319
        %v2321 = vrot.slane %v2157, %v2320
        %v2323 = vunpack.c.l.s4 269488144
        %v2324 = vunpack.c.0.s8 %v2323
        %v2325 = vlaneseq
        %v2326 = vshrl.u32 %v2325, 7
        %v2327 = vsub.s32 %v2324, %v2326
        %v2328 = vrot.slane %v2161, %v2327
        %v2330 = vunpack.c.l.s4 269488144
        %v2331 = vunpack.c.0.s8 %v2330
        %v2332 = vlaneseq
        %v2333 = vshrl.u32 %v2332, 7
        %v2334 = vsub.s32 %v2331, %v2333
        %v2335 = vrot.slane %v2165, %v2334
        %v2337 = vunpack.c.l.s4 269488144
        %v2338 = vunpack.c.0.s8 %v2337
        %v2339 = vlaneseq
        %v2340 = vshrl.u32 %v2339, 7
        %v2341 = vsub.s32 %v2338, %v2340
        %v2342 = vrot.slane %v2169, %v2341
        %v2344 = vunpack.c.l.s4 269488144
        %v2345 = vunpack.c.0.s8 %v2344
        %v2346 = vlaneseq
        %v2347 = vshrl.u32 %v2346, 7
        %v2348 = vsub.s32 %v2345, %v2347
        %v2349 = vrot.slane %v2173, %v2348
        %v2351 = vunpack.c.l.s4 269488144
        %v2352 = vunpack.c.0.s8 %v2351
        %v2353 = vlaneseq
        %v2354 = vshrl.u32 %v2353, 7
        %v2355 = vsub.s32 %v2352, %v2354
        %v2356 = vrot.slane %v2177, %v2355
        %v2358 = vunpack.c.l.s4 269488144
        %v2359 = vunpack.c.0.s8 %v2358
        %v2360 = vlaneseq
        %v2361 = vshrl.u32 %v2360, 7
        %v2362 = vsub.s32 %v2359, %v2361
        %v2363 = vrot.slane %v2181, %v2362
        %v2365 = vunpack.c.l.s4 269488144
        %v2366 = vunpack.c.0.s8 %v2365
        %v2367 = vlaneseq
        %v2368 = vshrl.u32 %v2367, 7
        %v2369 = vsub.s32 %v2366, %v2368
        %v2370 = vrot.slane %v2185, %v2369
        %v2372 = vunpack.c.l.s4 269488144
        %v2373 = vunpack.c.0.s8 %v2372
        %v2374 = vlaneseq
        %v2375 = vshrl.u32 %v2374, 7
        %v2376 = vsub.s32 %v2373, %v2375
        %v2377 = vrot.slane %v2189, %v2376
        %v2379 = vunpack.c.l.s4 269488144
        %v2380 = vunpack.c.0.s8 %v2379
        %v2381 = vlaneseq
        %v2382 = vshrl.u32 %v2381, 7
        %v2383 = vsub.s32 %v2380, %v2382
        %v2384 = vrot.slane %v2193, %v2383
        %v2386 = vunpack.c.l.s4 269488144
        %v2387 = vunpack.c.0.s8 %v2386
        %v2388 = vlaneseq
        %v2389 = vshrl.u32 %v2388, 7
        %v2390 = vsub.s32 %v2387, %v2389
        %v2391 = vrot.slane %v2197, %v2390
        %v2393 = vunpack.c.l.s4 269488144
        %v2394 = vunpack.c.0.s8 %v2393
        %v2395 = vlaneseq
        %v2396 = vshrl.u32 %v2395, 7
        %v2397 = vsub.s32 %v2394, %v2396
        %v2398 = vrot.slane %v2201, %v2397
        %v2400 = vunpack.c.l.s4 269488144
        %v2401 = vunpack.c.0.s8 %v2400
        %v2402 = vlaneseq
        %v2403 = vshrl.u32 %v2402, 7
        %v2404 = vsub.s32 %v2401, %v2403
        %v2405 = vrot.slane %v2205, %v2404
        %v2407 = vunpack.c.l.s4 269488144
        %v2408 = vunpack.c.0.s8 %v2407
        %v2409 = vlaneseq
        %v2410 = vshrl.u32 %v2409, 7
        %v2411 = vsub.s32 %v2408, %v2410
        %v2412 = vrot.slane %v2209, %v2411
        %v2414 = vunpack.c.l.s4 269488144
        %v2415 = vunpack.c.0.s8 %v2414
        %v2416 = vlaneseq
        %v2417 = vshrl.u32 %v2416, 7
        %v2418 = vsub.s32 %v2415, %v2417
        %v2419 = vrot.slane %v2213, %v2418
        %v2421 = vunpack.c.l.s4 269488144
        %v2422 = vunpack.c.0.s8 %v2421
        %v2423 = vlaneseq
        %v2424 = vshrl.u32 %v2423, 7
        %v2425 = vsub.s32 %v2422, %v2424
        %v2426 = vrot.slane %v2217, %v2425
        %v2428 = vunpack.c.l.s4 269488144
        %v2429 = vunpack.c.0.s8 %v2428
        %v2430 = vlaneseq
        %v2431 = vshrl.u32 %v2430, 7
        %v2432 = vsub.s32 %v2429, %v2431
        %v2433 = vrot.slane %v2221, %v2432
        %v2435 = vunpack.c.l.s4 269488144
        %v2436 = vunpack.c.0.s8 %v2435
        %v2437 = vlaneseq
        %v2438 = vshrl.u32 %v2437, 7
        %v2439 = vsub.s32 %v2436, %v2438
        %v2440 = vrot.slane %v2225, %v2439
        %v2442 = vunpack.c.l.s4 269488144
        %v2443 = vunpack.c.0.s8 %v2442
        %v2444 = vlaneseq
        %v2445 = vshrl.u32 %v2444, 7
        %v2446 = vsub.s32 %v2443, %v2445
        %v2447 = vrot.slane %v2229, %v2446
        %v2449 = vunpack.c.l.s4 269488144
        %v2450 = vunpack.c.0.s8 %v2449
        %v2451 = vlaneseq
        %v2452 = vshrl.u32 %v2451, 7
        %v2453 = vsub.s32 %v2450, %v2452
        %v2454 = vrot.slane %v2233, %v2453
        %v2456 = vunpack.c.l.s4 269488144
        %v2457 = vunpack.c.0.s8 %v2456
        %v2458 = vlaneseq
        %v2459 = vshrl.u32 %v2458, 7
        %v2460 = vsub.s32 %v2457, %v2459
        %v2461 = vrot.slane %v2237, %v2460
        %v2494 = vmul.f32 %v189, %v2244
        %v2495 = vmul.f32 %v190, %v2251
        %v2496 = vmul.f32 %v191, %v2258
        %v2497 = vmul.f32 %v192, %v2265
        %v2498 = vmul.f32 %v193, %v2272
        %v2499 = vmul.f32 %v194, %v2279
        %v2500 = vmul.f32 %v195, %v2286
        %v2501 = vmul.f32 %v196, %v2293
        %v2502 = vmul.f32 %v197, %v2300
        %v2503 = vmul.f32 %v198, %v2307
        %v2504 = vmul.f32 %v199, %v2314
        %v2505 = vmul.f32 %v200, %v2321
        %v2506 = vmul.f32 %v201, %v2328
        %v2507 = vmul.f32 %v202, %v2335
        %v2508 = vmul.f32 %v203, %v2342
        %v2509 = vmul.f32 %v204, %v2349
        %v2510 = vmul.f32 %v205, %v2356
        %v2511 = vmul.f32 %v206, %v2363
        %v2512 = vmul.f32 %v207, %v2370
        %v2513 = vmul.f32 %v208, %v2377
        %v2514 = vmul.f32 %v209, %v2384
        %v2515 = vmul.f32 %v210, %v2391
        %v2516 = vmul.f32 %v211, %v2398
        %v2517 = vmul.f32 %v212, %v2405
        %v2518 = vmul.f32 %v213, %v2412
        %v2519 = vmul.f32 %v214, %v2419
        %v2520 = vmul.f32 %v215, %v2426
        %v2521 = vmul.f32 %v216, %v2433
        %v2522 = vmul.f32 %v217, %v2440
        %v2523 = vmul.f32 %v218, %v2447
        %v2524 = vmul.f32 %v219, %v2454
        %v2525 = vmul.f32 %v220, %v2461
        %2527 = vset.pattern.permute.xlu0 0
        %2528 = vperm.xlu0 %2527, %v2078
        %v2529 = vpop.permute.xlu0 %2528
        %2531 = vset.pattern.permute.xlu0 0
        %2532 = vperm.xlu0 %2531, %v2079
        %v2533 = vpop.permute.xlu0 %2532
        %2535 = vset.pattern.permute.xlu0 0
        %2536 = vperm.xlu0 %2535, %v2080
        %v2537 = vpop.permute.xlu0 %2536
        %2539 = vset.pattern.permute.xlu0 0
        %2540 = vperm.xlu0 %2539, %v2081
        %v2541 = vpop.permute.xlu0 %2540
        %2543 = vset.pattern.permute.xlu0 0
        %2544 = vperm.xlu0 %2543, %v2082
        %v2545 = vpop.permute.xlu0 %2544
        %2547 = vset.pattern.permute.xlu0 0
        %2548 = vperm.xlu0 %2547, %v2083
        %v2549 = vpop.permute.xlu0 %2548
        %2551 = vset.pattern.permute.xlu0 0
        %2552 = vperm.xlu0 %2551, %v2084
        %v2553 = vpop.permute.xlu0 %2552
        %2555 = vset.pattern.permute.xlu0 0
        %2556 = vperm.xlu0 %2555, %v2085
        %v2557 = vpop.permute.xlu0 %2556
        %2559 = vset.pattern.permute.xlu0 0
        %2560 = vperm.xlu0 %2559, %v2086
        %v2561 = vpop.permute.xlu0 %2560
        %2563 = vset.pattern.permute.xlu0 0
        %2564 = vperm.xlu0 %2563, %v2087
        %v2565 = vpop.permute.xlu0 %2564
        %2567 = vset.pattern.permute.xlu0 0
        %2568 = vperm.xlu0 %2567, %v2088
        %v2569 = vpop.permute.xlu0 %2568
        %2571 = vset.pattern.permute.xlu0 0
        %2572 = vperm.xlu0 %2571, %v2089
        %v2573 = vpop.permute.xlu0 %2572
        %2575 = vset.pattern.permute.xlu0 0
        %2576 = vperm.xlu0 %2575, %v2090
        %v2577 = vpop.permute.xlu0 %2576
        %2579 = vset.pattern.permute.xlu0 0
        %2580 = vperm.xlu0 %2579, %v2091
        %v2581 = vpop.permute.xlu0 %2580
        %2583 = vset.pattern.permute.xlu0 0
        %2584 = vperm.xlu0 %2583, %v2092
        %v2585 = vpop.permute.xlu0 %2584
        %2587 = vset.pattern.permute.xlu0 0
        %2588 = vperm.xlu0 %2587, %v2093
        %v2589 = vpop.permute.xlu0 %2588
        %2591 = vset.pattern.permute.xlu0 0
        %2592 = vperm.xlu0 %2591, %v2094
        %v2593 = vpop.permute.xlu0 %2592
        %2595 = vset.pattern.permute.xlu0 0
        %2596 = vperm.xlu0 %2595, %v2095
        %v2597 = vpop.permute.xlu0 %2596
        %2599 = vset.pattern.permute.xlu0 0
        %2600 = vperm.xlu0 %2599, %v2096
        %v2601 = vpop.permute.xlu0 %2600
        %2603 = vset.pattern.permute.xlu0 0
        %2604 = vperm.xlu0 %2603, %v2097
        %v2605 = vpop.permute.xlu0 %2604
        %2607 = vset.pattern.permute.xlu0 0
        %2608 = vperm.xlu0 %2607, %v2098
        %v2609 = vpop.permute.xlu0 %2608
        %2611 = vset.pattern.permute.xlu0 0
        %2612 = vperm.xlu0 %2611, %v2099
        %v2613 = vpop.permute.xlu0 %2612
        %2615 = vset.pattern.permute.xlu0 0
        %2616 = vperm.xlu0 %2615, %v2100
        %v2617 = vpop.permute.xlu0 %2616
        %2619 = vset.pattern.permute.xlu0 0
        %2620 = vperm.xlu0 %2619, %v2101
        %v2621 = vpop.permute.xlu0 %2620
        %2623 = vset.pattern.permute.xlu0 0
        %2624 = vperm.xlu0 %2623, %v2102
        %v2625 = vpop.permute.xlu0 %2624
        %2627 = vset.pattern.permute.xlu0 0
        %2628 = vperm.xlu0 %2627, %v2103
        %v2629 = vpop.permute.xlu0 %2628
        %2631 = vset.pattern.permute.xlu0 0
        %2632 = vperm.xlu0 %2631, %v2104
        %v2633 = vpop.permute.xlu0 %2632
        %2635 = vset.pattern.permute.xlu0 0
        %2636 = vperm.xlu0 %2635, %v2105
        %v2637 = vpop.permute.xlu0 %2636
        %2639 = vset.pattern.permute.xlu0 0
        %2640 = vperm.xlu0 %2639, %v2106
        %v2641 = vpop.permute.xlu0 %2640
        %2643 = vset.pattern.permute.xlu0 0
        %2644 = vperm.xlu0 %2643, %v2107
        %v2645 = vpop.permute.xlu0 %2644
        %2647 = vset.pattern.permute.xlu0 0
        %2648 = vperm.xlu0 %2647, %v2108
        %v2649 = vpop.permute.xlu0 %2648
        %2651 = vset.pattern.permute.xlu0 0
        %2652 = vperm.xlu0 %2651, %v2109
        %v2653 = vpop.permute.xlu0 %2652
        %v2655 = vunpack.c.l.s4 269488144
        %v2656 = vunpack.c.0.s8 %v2655
        %v2657 = vlaneseq
        %v2658 = vshrl.u32 %v2657, 7
        %v2659 = vsub.s32 %v2656, %v2658
        %v2660 = vrot.slane %v2529, %v2659
        %v2662 = vunpack.c.l.s4 269488144
        %v2663 = vunpack.c.0.s8 %v2662
        %v2664 = vlaneseq
        %v2665 = vshrl.u32 %v2664, 7
        %v2666 = vsub.s32 %v2663, %v2665
        %v2667 = vrot.slane %v2533, %v2666
        %v2669 = vunpack.c.l.s4 269488144
        %v2670 = vunpack.c.0.s8 %v2669
        %v2671 = vlaneseq
        %v2672 = vshrl.u32 %v2671, 7
        %v2673 = vsub.s32 %v2670, %v2672
        %v2674 = vrot.slane %v2537, %v2673
        %v2676 = vunpack.c.l.s4 269488144
        %v2677 = vunpack.c.0.s8 %v2676
        %v2678 = vlaneseq
        %v2679 = vshrl.u32 %v2678, 7
        %v2680 = vsub.s32 %v2677, %v2679
        %v2681 = vrot.slane %v2541, %v2680
        %v2683 = vunpack.c.l.s4 269488144
        %v2684 = vunpack.c.0.s8 %v2683
        %v2685 = vlaneseq
        %v2686 = vshrl.u32 %v2685, 7
        %v2687 = vsub.s32 %v2684, %v2686
        %v2688 = vrot.slane %v2545, %v2687
        %v2690 = vunpack.c.l.s4 269488144
        %v2691 = vunpack.c.0.s8 %v2690
        %v2692 = vlaneseq
        %v2693 = vshrl.u32 %v2692, 7
        %v2694 = vsub.s32 %v2691, %v2693
        %v2695 = vrot.slane %v2549, %v2694
        %v2697 = vunpack.c.l.s4 269488144
        %v2698 = vunpack.c.0.s8 %v2697
        %v2699 = vlaneseq
        %v2700 = vshrl.u32 %v2699, 7
        %v2701 = vsub.s32 %v2698, %v2700
        %v2702 = vrot.slane %v2553, %v2701
        %v2704 = vunpack.c.l.s4 269488144
        %v2705 = vunpack.c.0.s8 %v2704
        %v2706 = vlaneseq
        %v2707 = vshrl.u32 %v2706, 7
        %v2708 = vsub.s32 %v2705, %v2707
        %v2709 = vrot.slane %v2557, %v2708
        %v2711 = vunpack.c.l.s4 269488144
        %v2712 = vunpack.c.0.s8 %v2711
        %v2713 = vlaneseq
        %v2714 = vshrl.u32 %v2713, 7
        %v2715 = vsub.s32 %v2712, %v2714
        %v2716 = vrot.slane %v2561, %v2715
        %v2718 = vunpack.c.l.s4 269488144
        %v2719 = vunpack.c.0.s8 %v2718
        %v2720 = vlaneseq
        %v2721 = vshrl.u32 %v2720, 7
        %v2722 = vsub.s32 %v2719, %v2721
        %v2723 = vrot.slane %v2565, %v2722
        %v2725 = vunpack.c.l.s4 269488144
        %v2726 = vunpack.c.0.s8 %v2725
        %v2727 = vlaneseq
        %v2728 = vshrl.u32 %v2727, 7
        %v2729 = vsub.s32 %v2726, %v2728
        %v2730 = vrot.slane %v2569, %v2729
        %v2732 = vunpack.c.l.s4 269488144
        %v2733 = vunpack.c.0.s8 %v2732
        %v2734 = vlaneseq
        %v2735 = vshrl.u32 %v2734, 7
        %v2736 = vsub.s32 %v2733, %v2735
        %v2737 = vrot.slane %v2573, %v2736
        %v2739 = vunpack.c.l.s4 269488144
        %v2740 = vunpack.c.0.s8 %v2739
        %v2741 = vlaneseq
        %v2742 = vshrl.u32 %v2741, 7
        %v2743 = vsub.s32 %v2740, %v2742
        %v2744 = vrot.slane %v2577, %v2743
        %v2746 = vunpack.c.l.s4 269488144
        %v2747 = vunpack.c.0.s8 %v2746
        %v2748 = vlaneseq
        %v2749 = vshrl.u32 %v2748, 7
        %v2750 = vsub.s32 %v2747, %v2749
        %v2751 = vrot.slane %v2581, %v2750
        %v2753 = vunpack.c.l.s4 269488144
        %v2754 = vunpack.c.0.s8 %v2753
        %v2755 = vlaneseq
        %v2756 = vshrl.u32 %v2755, 7
        %v2757 = vsub.s32 %v2754, %v2756
        %v2758 = vrot.slane %v2585, %v2757
        %v2760 = vunpack.c.l.s4 269488144
        %v2761 = vunpack.c.0.s8 %v2760
        %v2762 = vlaneseq
        %v2763 = vshrl.u32 %v2762, 7
        %v2764 = vsub.s32 %v2761, %v2763
        %v2765 = vrot.slane %v2589, %v2764
        %v2767 = vunpack.c.l.s4 269488144
        %v2768 = vunpack.c.0.s8 %v2767
        %v2769 = vlaneseq
        %v2770 = vshrl.u32 %v2769, 7
        %v2771 = vsub.s32 %v2768, %v2770
        %v2772 = vrot.slane %v2593, %v2771
        %v2774 = vunpack.c.l.s4 269488144
        %v2775 = vunpack.c.0.s8 %v2774
        %v2776 = vlaneseq
        %v2777 = vshrl.u32 %v2776, 7
        %v2778 = vsub.s32 %v2775, %v2777
        %v2779 = vrot.slane %v2597, %v2778
        %v2781 = vunpack.c.l.s4 269488144
        %v2782 = vunpack.c.0.s8 %v2781
        %v2783 = vlaneseq
        %v2784 = vshrl.u32 %v2783, 7
        %v2785 = vsub.s32 %v2782, %v2784
        %v2786 = vrot.slane %v2601, %v2785
        %v2788 = vunpack.c.l.s4 269488144
        %v2789 = vunpack.c.0.s8 %v2788
        %v2790 = vlaneseq
        %v2791 = vshrl.u32 %v2790, 7
        %v2792 = vsub.s32 %v2789, %v2791
        %v2793 = vrot.slane %v2605, %v2792
        %v2795 = vunpack.c.l.s4 269488144
        %v2796 = vunpack.c.0.s8 %v2795
        %v2797 = vlaneseq
        %v2798 = vshrl.u32 %v2797, 7
        %v2799 = vsub.s32 %v2796, %v2798
        %v2800 = vrot.slane %v2609, %v2799
        %v2802 = vunpack.c.l.s4 269488144
        %v2803 = vunpack.c.0.s8 %v2802
        %v2804 = vlaneseq
        %v2805 = vshrl.u32 %v2804, 7
        %v2806 = vsub.s32 %v2803, %v2805
        %v2807 = vrot.slane %v2613, %v2806
        %v2809 = vunpack.c.l.s4 269488144
        %v2810 = vunpack.c.0.s8 %v2809
        %v2811 = vlaneseq
        %v2812 = vshrl.u32 %v2811, 7
        %v2813 = vsub.s32 %v2810, %v2812
        %v2814 = vrot.slane %v2617, %v2813
        %v2816 = vunpack.c.l.s4 269488144
        %v2817 = vunpack.c.0.s8 %v2816
        %v2818 = vlaneseq
        %v2819 = vshrl.u32 %v2818, 7
        %v2820 = vsub.s32 %v2817, %v2819
        %v2821 = vrot.slane %v2621, %v2820
        %v2823 = vunpack.c.l.s4 269488144
        %v2824 = vunpack.c.0.s8 %v2823
        %v2825 = vlaneseq
        %v2826 = vshrl.u32 %v2825, 7
        %v2827 = vsub.s32 %v2824, %v2826
        %v2828 = vrot.slane %v2625, %v2827
        %v2830 = vunpack.c.l.s4 269488144
        %v2831 = vunpack.c.0.s8 %v2830
        %v2832 = vlaneseq
        %v2833 = vshrl.u32 %v2832, 7
        %v2834 = vsub.s32 %v2831, %v2833
        %v2835 = vrot.slane %v2629, %v2834
        %v2837 = vunpack.c.l.s4 269488144
        %v2838 = vunpack.c.0.s8 %v2837
        %v2839 = vlaneseq
        %v2840 = vshrl.u32 %v2839, 7
        %v2841 = vsub.s32 %v2838, %v2840
        %v2842 = vrot.slane %v2633, %v2841
        %v2844 = vunpack.c.l.s4 269488144
        %v2845 = vunpack.c.0.s8 %v2844
        %v2846 = vlaneseq
        %v2847 = vshrl.u32 %v2846, 7
        %v2848 = vsub.s32 %v2845, %v2847
        %v2849 = vrot.slane %v2637, %v2848
        %v2851 = vunpack.c.l.s4 269488144
        %v2852 = vunpack.c.0.s8 %v2851
        %v2853 = vlaneseq
        %v2854 = vshrl.u32 %v2853, 7
        %v2855 = vsub.s32 %v2852, %v2854
        %v2856 = vrot.slane %v2641, %v2855
        %v2858 = vunpack.c.l.s4 269488144
        %v2859 = vunpack.c.0.s8 %v2858
        %v2860 = vlaneseq
        %v2861 = vshrl.u32 %v2860, 7
        %v2862 = vsub.s32 %v2859, %v2861
        %v2863 = vrot.slane %v2645, %v2862
        %v2865 = vunpack.c.l.s4 269488144
        %v2866 = vunpack.c.0.s8 %v2865
        %v2867 = vlaneseq
        %v2868 = vshrl.u32 %v2867, 7
        %v2869 = vsub.s32 %v2866, %v2868
        %v2870 = vrot.slane %v2649, %v2869
        %v2872 = vunpack.c.l.s4 269488144
        %v2873 = vunpack.c.0.s8 %v2872
        %v2874 = vlaneseq
        %v2875 = vshrl.u32 %v2874, 7
        %v2876 = vsub.s32 %v2873, %v2875
        %v2877 = vrot.slane %v2653, %v2876
        %v2910 = vadd.f32 %v2494, %v2660
        %v2911 = vadd.f32 %v2495, %v2667
        %v2912 = vadd.f32 %v2496, %v2674
        %v2913 = vadd.f32 %v2497, %v2681
        %v2914 = vadd.f32 %v2498, %v2688
        %v2915 = vadd.f32 %v2499, %v2695
        %v2916 = vadd.f32 %v2500, %v2702
        %v2917 = vadd.f32 %v2501, %v2709
        %v2918 = vadd.f32 %v2502, %v2716
        %v2919 = vadd.f32 %v2503, %v2723
        %v2920 = vadd.f32 %v2504, %v2730
        %v2921 = vadd.f32 %v2505, %v2737
        %v2922 = vadd.f32 %v2506, %v2744
        %v2923 = vadd.f32 %v2507, %v2751
        %v2924 = vadd.f32 %v2508, %v2758
        %v2925 = vadd.f32 %v2509, %v2765
        %v2926 = vadd.f32 %v2510, %v2772
        %v2927 = vadd.f32 %v2511, %v2779
        %v2928 = vadd.f32 %v2512, %v2786
        %v2929 = vadd.f32 %v2513, %v2793
        %v2930 = vadd.f32 %v2514, %v2800
        %v2931 = vadd.f32 %v2515, %v2807
        %v2932 = vadd.f32 %v2516, %v2814
        %v2933 = vadd.f32 %v2517, %v2821
        %v2934 = vadd.f32 %v2518, %v2828
        %v2935 = vadd.f32 %v2519, %v2835
        %v2936 = vadd.f32 %v2520, %v2842
        %v2937 = vadd.f32 %v2521, %v2849
        %v2938 = vadd.f32 %v2522, %v2856
        %v2939 = vadd.f32 %v2523, %v2863
        %v2940 = vadd.f32 %v2524, %v2870
        %v2941 = vadd.f32 %v2525, %v2877
        %2942 = vst [vmem:[%s188] sm:$0xf] %v2910
        %2943 = vst [vmem:[%s188 + $0x4] sm:$0xf] %v2911
        %2944 = vst [vmem:[%s188 + $0x8] sm:$0xf] %v2912
        %2945 = vst [vmem:[%s188 + $0xc] sm:$0xf] %v2913
        %2946 = vst [vmem:[%s188 + $0x10] sm:$0xf] %v2914
        %2947 = vst [vmem:[%s188 + $0x14] sm:$0xf] %v2915
        %2948 = vst [vmem:[%s188 + $0x18] sm:$0xf] %v2916
        %2949 = vst [vmem:[%s188 + $0x1c] sm:$0xf] %v2917
        %2950 = vst [vmem:[%s188 + $0x20] sm:$0xf] %v2918
        %2951 = vst [vmem:[%s188 + $0x24] sm:$0xf] %v2919
        %2952 = vst [vmem:[%s188 + $0x28] sm:$0xf] %v2920
        %2953 = vst [vmem:[%s188 + $0x2c] sm:$0xf] %v2921
        %2954 = vst [vmem:[%s188 + $0x30] sm:$0xf] %v2922
        %2955 = vst [vmem:[%s188 + $0x34] sm:$0xf] %v2923
        %2956 = vst [vmem:[%s188 + $0x38] sm:$0xf] %v2924
        %2957 = vst [vmem:[%s188 + $0x3c] sm:$0xf] %v2925
        %2958 = vst [vmem:[%s188 + $0x40] sm:$0xf] %v2926
        %2959 = vst [vmem:[%s188 + $0x44] sm:$0xf] %v2927
        %2960 = vst [vmem:[%s188 + $0x48] sm:$0xf] %v2928
        %2961 = vst [vmem:[%s188 + $0x4c] sm:$0xf] %v2929
        %2962 = vst [vmem:[%s188 + $0x50] sm:$0xf] %v2930
        %2963 = vst [vmem:[%s188 + $0x54] sm:$0xf] %v2931
        %2964 = vst [vmem:[%s188 + $0x58] sm:$0xf] %v2932
        %2965 = vst [vmem:[%s188 + $0x5c] sm:$0xf] %v2933
        %2966 = vst [vmem:[%s188 + $0x60] sm:$0xf] %v2934
        %2967 = vst [vmem:[%s188 + $0x64] sm:$0xf] %v2935
        %2968 = vst [vmem:[%s188 + $0x68] sm:$0xf] %v2936
        %2969 = vst [vmem:[%s188 + $0x6c] sm:$0xf] %v2937
        %2970 = vst [vmem:[%s188 + $0x70] sm:$0xf] %v2938
        %2971 = vst [vmem:[%s188 + $0x74] sm:$0xf] %v2939
        %2972 = vst [vmem:[%s188 + $0x78] sm:$0xf] %v2940
        %2973 = vst [vmem:[%s188 + $0x7c] sm:$0xf] %v2941
        %s2974 = sand.u32 %s96, 1
        %s2975 = scalar_lea.sflag [#allocation4], %s2974
        %s2976 = sand.u32 %s96, 1
        %s2977 = smul.addr %s2976, 128
        %s2978 = scalar_lea.vmem [#allocation5], %s2977
        // Predicated region
        $region37: #{tpu_custom_call.1} parent=31 // pred_check
          %p2979 = pneg %p106
        $region38: #{tpu_custom_call.1} parent=31 // pred_check_branch
          %2981 = sbr.rel (%p2979) target = $region40
        $region39: #{tpu_custom_call.1} parent=31 // pred_region
          %s2983 = ssub.s32 2048, 2048
          %2984 = vsyncadd %s2975, %s2983
          %s2985 = smul.addr %s20, 64
          %s2986 = smul.addr %s2985, 32
          %s2987 = scalar_lea.hbm %s3, %s2986
          %s2988 = sshll.u32 %s2978, 4
          %s2989 = int_to_ptr.vmem [resolvable:$true] %s2988
          %2994 = dma.vmem_to_hbm [thread:$0]  %s2989, 2048, %s2987, %s2975, 64, 64, 4
        $region40: #{tpu_custom_call.1} parent=31 // pred_fallthru
          _
      $region32: #{tpu_custom_call.1} parent=5 // pred_fallthru
        _
      %p2995 = scmp.le.s32.totalorder 2, %s15
      // Predicated region
      $region41: #{tpu_custom_call.1} parent=5 // pred_check
        %p2996 = pneg %p2995
      $region42: #{tpu_custom_call.1} parent=5 // pred_check_branch
        %2998 = sbr.rel (%p2996) target = $region44
      $region43: #{tpu_custom_call.1} parent=5 // pred_region
        %s2999 = ssub.s32 %s15, 2
        // Predicated region
        $region45: #{tpu_custom_call.1} parent=43 // pred_check
          %p3000 = pneg %p112
        $region46: #{tpu_custom_call.1} parent=43 // pred_check_branch
          %3002 = sbr.rel (%p3000) target = $region48
        $region47: #{tpu_custom_call.1} parent=43 // pred_region
          %s3003 = sand.u32 %s97, 1
          %s3004 = scalar_lea.sflag [#allocation4], %s3003
          %s3005 = sand.u32 %s97, 1
          %s3006 = smul.addr %s3005, 128
          %s3007 = scalar_lea.vmem [#allocation5], %s3006
          %3008 = dma.done %s3004, 2048
        $region48: #{tpu_custom_call.1} parent=43 // pred_fallthru
          _
      $region44: #{tpu_custom_call.1} parent=5 // pred_fallthru
        _
    $region6: #{tpu_custom_call.1} parent=1 // loop_footer
      %s19 = sadd.s32 1, %s15
    $region7: #{tpu_custom_call.1} parent=1 // loop_footer_branch
      %14 = sbr.rel target = $region3
    $region8: #{tpu_custom_call.1} parent=1 // loop_exit
      _
    %3009 = vsyncpa [#allocation3], 1
    %s3010 = scalar_lea.sflag [#allocation3], 1
    %3011 = vsyncpa %s3010, 1
    %3012 = vsyncpa [#allocation4], 1
    %s3013 = scalar_lea.sflag [#allocation4], 1
    %3014 = vsyncpa %s3013, 1

</llo_original>
